<compile_context>
chip_gen: v7x
topology: tpu7x:2x2x1
jax: 0.10.0
libtpu: 0.0.40
codegen_flags: <defaults>
</compile_context>

<pallas_src>
import jax
import jax.numpy as jnp
from jax import lax
from jax.experimental import pallas as pl
from jax.experimental.pallas import tpu as pltpu


def _make_kernel(kd, kh, kw, c_in, c_out, d_out, d_in, w_pad, r_lane, idx_d):
    """Build the kernel body (closes over the static shape parameters)."""
    taps = [(ikd, ikh, ikw)
            for ikd in range(kd) for ikh in range(kh) for ikw in range(kw)]

    def kernel(x_ref, w_ref, o_ref, cols_ref):
        # x_ref   : VMEM (1, D_pad, C_in, P_rows)   padded, spatial-in-lanes batch slab
        # w_ref   : VMEM (C_out, K)                 folded im2col weights (resident)
        # o_ref   : VMEM (1, C_out, D_in * r_lane)  lane-dense output (128-aligned)
        # cols_ref: VMEM (K, D_out * r_lane)        im2col scratch
        #
        # Build the im2col matrix for every unique conv output depth.  Each tap is one
        # sublane-windowed, lane-dense copy of shape (C_in, r_lane).
        for od in range(d_out):
            for t, (ikd, ikh, ikw) in enumerate(taps):
                off = ikh * w_pad + ikw
                cols_ref[t * c_in:(t + 1) * c_in,
                         od * r_lane:(od + 1) * r_lane] = (
                    x_ref[0, od + ikd, :, off:off + r_lane])

        # One folded-K matmul per batch on the MXU: (C_out, K) @ (K, D_out*r_lane).
        res = jnp.dot(w_ref[...], cols_ref[...],
                      preferred_element_type=jnp.float32)

        # Fused nearest-neighbour depth interpolation: replicate conv depths into the
        # D_in output depths with 128-aligned, unmasked stores (static source table).
        for d in range(d_in):
            s = idx_d[d]
            o_ref[0, :, d * r_lane:(d + 1) * r_lane] = (
                res[:, s * r_lane:(s + 1) * r_lane].astype(o_ref.dtype))

    return kernel


def conv_deconv3d(x, weight, padding, *, compute_dtype=None):
    """Conv3d(stride=1, bias=False) + F.interpolate(size=input DHW, mode='nearest').

    x      : (N, C_in, D, H, W)
    weight : (C_out, C_in, KD, KH, KW)
    padding: (pd, ph, pw)
    compute_dtype: optional dtype (e.g. jnp.bfloat16) for the matmul operands;
      accumulation stays f32.  Default (None) keeps the input dtype.
    """
    n, c_in, d_in, h_in, w_in = x.shape
    c_out, c_in_w, kd, kh, kw = weight.shape
    assert c_in == c_in_w
    pd, ph, pw = padding

    d_out = d_in + 2 * pd - kd + 1
    h_out = h_in + 2 * ph - kh + 1
    w_out = w_in + 2 * pw - kw + 1
    assert d_out >= 1 and h_out >= 1 and w_out >= 1

    d_pad = d_in + 2 * pd
    w_pad = w_in + 2 * pw

    # "Wide-row" im2col geometry: the padded (H, W) plane is flattened so each kernel
    # tap is a single contiguous lane slice of length r_lane.  r_lane is rounded up to
    # a multiple of 128 so the output and replication stores are unmasked, and extra
    # zero H-rows at the bottom give every tap slice in-bounds slack.
    r_rows = h_out * w_pad
    r_lane = ((r_rows + 127) // 128) * 128
    max_off = (kh - 1) * w_pad + (kw - 1)
    h_tot = max(-(-(max_off + r_lane) // w_pad), h_in + 2 * ph)
    pad_bottom = h_tot - h_in - ph
    p_rows = h_tot * w_pad

    cdt = jnp.dtype(compute_dtype) if compute_dtype is not None else x.dtype

    # Channels-before-spatial layout: flattened spatial in lanes, channels in sublanes.
    x_cl = jnp.transpose(x, (0, 2, 1, 3, 4))                     # (N, D, C_in, H, W)
    x_padded = jnp.pad(x_cl,
                       ((0, 0), (pd, pd), (0, 0), (ph, pad_bottom), (pw, pw)))
    x_flat = x_padded.reshape(n, d_pad, c_in, p_rows).astype(cdt)

    # Folded im2col weights, K ordered as ((ikd, ikh, ikw), c_in) to match cols_ref.
    k_dim = kd * kh * kw * c_in
    w_col = jnp.transpose(weight, (0, 2, 3, 4, 1)).reshape(c_out, k_dim).astype(cdt)

    # PyTorch F.interpolate(mode='nearest'): src = floor(dst * src_size / dst_size).
    # Purely static -> plain Python table, no scalar prefetch needed.
    idx_d = [min(i * d_out // d_in, d_out - 1) for i in range(d_in)]

    kernel = _make_kernel(kd, kh, kw, c_in, c_out, d_out, d_in, w_pad, r_lane, idx_d)

    # Explicit VMEM budget (counts double-buffered blocks + scratch, with lane/sublane
    # padding), clamped so it is valid on v7x (64 MiB physical) as well as v5e/v6e.
    itemsize = jnp.dtype(cdt).itemsize
    rup = lambda v, m: -(-v // m) * m
    x_blk = d_pad * rup(c_in, 8) * rup(p_rows, 128) * itemsize
    w_blk = rup(c_out, 8) * rup(k_dim, 128) * itemsize
    o_blk = rup(c_out, 8) * d_in * r_lane * jnp.dtype(x.dtype).itemsize
    cols_blk = rup(k_dim, 8) * d_out * r_lane * itemsize
    vmem_need = 2 * (x_blk + w_blk + o_blk) + cols_blk
    vmem_limit = int(min(64 * 1024 * 1024, max(2 * vmem_need, 16 * 1024 * 1024)))

    y_wide = pl.pallas_call(
        kernel,
        out_shape=jax.ShapeDtypeStruct((n, c_out, d_in * r_lane), x.dtype),
        grid_spec=pltpu.PrefetchScalarGridSpec(
            num_scalar_prefetch=0,
            grid=(n,),
            in_specs=[
                # Whole padded volume of batch b (spatial-in-lanes, so no 4->128 lane
                # padding blow-up); streamed once per grid step.
                pl.BlockSpec((1, d_pad, c_in, p_rows), lambda b: (b, 0, 0, 0)),
                # Tiny folded weight matrix, VMEM-resident for the whole grid.
                pl.BlockSpec((c_out, k_dim), lambda b: (0, 0)),
            ],
            out_specs=pl.BlockSpec((1, c_out, d_in * r_lane), lambda b: (b, 0, 0)),
            scratch_shapes=[pltpu.VMEM((k_dim, d_out * r_lane), cdt)],
        ),
        compiler_params=pltpu.CompilerParams(
            dimension_semantics=("parallel",),
            vmem_limit_bytes=vmem_limit),
    )(x_flat, w_col)

    # Drop garbage lane padding / wide columns.  Depth interpolation is fused in the
    # kernel; H/W nearest gathers are only emitted if the conv changed H/W.
    y = y_wide.reshape(n, c_out, d_in, r_lane)[..., :r_rows]
    y = y.reshape(n, c_out, d_in, h_out, w_pad)[..., :w_out]
    if h_out != h_in:
        idx_h = (jnp.arange(h_in) * h_out // h_in).astype(jnp.int32)
        y = jnp.take(y, idx_h, axis=3)
    if w_out != w_in:
        idx_w = (jnp.arange(w_in) * w_out // w_in).astype(jnp.int32)
        y = jnp.take(y, idx_w, axis=4)
    return y                                                      # (N, C_out, D, H, W)


def _reference(x, weight, padding):
    """Pure-JAX reference (lax conv + nearest gather), NCDHW."""
    dn = lax.conv_dimension_numbers(x.shape, weight.shape,
                                    ('NCDHW', 'OIDHW', 'NCDHW'))
    y = lax.conv_general_dilated(x, weight, window_strides=(1, 1, 1),
                                 padding=[(p, p) for p in padding],
                                 dimension_numbers=dn)
    d, h, w = x.shape[2:]
    d_out, h_out, w_out = y.shape[2:]
    idx_d = (jnp.arange(d) * d_out // d).astype(jnp.int32)
    idx_h = (jnp.arange(h) * h_out // h).astype(jnp.int32)
    idx_w = (jnp.arange(w) * w_out // w).astype(jnp.int32)
    y = jnp.take(y, idx_d, axis=2)
    y = jnp.take(y, idx_h, axis=3)
    y = jnp.take(y, idx_w, axis=4)
    return y


if __name__ == "__main__":
    # Shapes consistent with E3DLSTM usage: kernel (2,3,3), padding (0,1,1)
    # -> conv shrinks the depth axis, nearest interpolation restores it.
    N, C_IN, C_OUT = 2, 4, 8
    D, H, W = 4, 8, 8
    KSIZE = (2, 3, 3)
    PADDING = (0, 1, 1)

    key = jax.random.PRNGKey(0)
    kx, kw_ = jax.random.split(key)
    x = jax.random.normal(kx, (N, C_IN, D, H, W), dtype=jnp.float32)
    weight = 0.1 * jax.random.normal(kw_, (C_OUT, C_IN) + KSIZE, dtype=jnp.float32)

    fn = jax.jit(lambda a, b: conv_deconv3d(a, b, PADDING))
    out = jax.block_until_ready(fn(x, weight))

    ref = _reference(x, weight, PADDING)
    assert out.shape == (N, C_OUT, D, H, W), out.shape
    assert jnp.allclose(out, ref, rtol=1e-4, atol=1e-4), "mismatch vs reference"

    print("KERNEL_OK")
</pallas_src>

<mosaic_0001>
module attributes {stable_mosaic.version = 11 : i64} {
  func.func @kernel(%arg0: i32, %arg1: memref<1x4x4x150xf32, #tpu.memory_space<vmem>>, %arg2: memref<8x72xf32, #tpu.memory_space<vmem>>, %arg3: memref<1x8x512xf32, #tpu.memory_space<vmem>>, %arg4: memref<72x384xf32, #tpu.memory_space<vmem>>) attributes {dimension_semantics = [#tpu.dimension_semantics<parallel>], iteration_bounds = array<i64: 2>, scalar_prefetch = 0 : i64, scratch_operands = 1 : i64, tpu.core_type = #tpu.core_type<tc>, window_params = [{transform_indices = @transform_0, window_bounds = array<i64: 1, 4, 4, 150>}, {pipeline_mode = #tpu.pipeline_mode<synchronous>, transform_indices = @transform_1, window_bounds = array<i64: 8, 72>}, {transform_indices = @transform_2, window_bounds = array<i64: 1, 8, 512>}]} {
    %c0 = arith.constant 0 : index
    %c0_0 = arith.constant 0 : index
    %c0_1 = arith.constant 0 : index
    %c0_2 = arith.constant 0 : index
    %0 = vector.load %arg1[%c0, %c0_0, %c0_1, %c0_2] : memref<1x4x4x150xf32, #tpu.memory_space<vmem>>, vector<1x1x4x128xf32>
    %1 = vector.shape_cast %0 : vector<1x1x4x128xf32> to vector<4x128xf32>
    %c0_3 = arith.constant 0 : index
    %c0_4 = arith.constant 0 : index
    %2 = vector.load %arg4[%c0_3, %c0_4] : memref<72x384xf32, #tpu.memory_space<vmem>>, vector<4x128xf32>
    tpu.vector_store %arg4[%c0_3, %c0_4], %1 {strides = array<i32>} : memref<72x384xf32, #tpu.memory_space<vmem>>, vector<4x128xf32>,
    %c0_5 = arith.constant 0 : index
    %c0_6 = arith.constant 0 : index
    %c0_7 = arith.constant 0 : index
    %c1 = arith.constant 1 : index
    %3 = vector.load %arg1[%c0_5, %c0_6, %c0_7, %c1] : memref<1x4x4x150xf32, #tpu.memory_space<vmem>>, vector<1x1x4x128xf32>
    %4 = vector.shape_cast %3 : vector<1x1x4x128xf32> to vector<4x128xf32>
    %c4 = arith.constant 4 : index
    %c0_8 = arith.constant 0 : index
    %5 = vector.load %arg4[%c4, %c0_8] : memref<72x384xf32, #tpu.memory_space<vmem>>, vector<4x128xf32>
    tpu.vector_store %arg4[%c4, %c0_8], %4 {strides = array<i32>} : memref<72x384xf32, #tpu.memory_space<vmem>>, vector<4x128xf32>,
    %c0_9 = arith.constant 0 : index
    %c0_10 = arith.constant 0 : index
    %c0_11 = arith.constant 0 : index
    %c2 = arith.constant 2 : index
    %6 = vector.load %arg1[%c0_9, %c0_10, %c0_11, %c2] : memref<1x4x4x150xf32, #tpu.memory_space<vmem>>, vector<1x1x4x128xf32>
    %7 = vector.shape_cast %6 : vector<1x1x4x128xf32> to vector<4x128xf32>
    %c8 = arith.constant 8 : index
    %c0_12 = arith.constant 0 : index
    %8 = vector.load %arg4[%c8, %c0_12] : memref<72x384xf32, #tpu.memory_space<vmem>>, vector<4x128xf32>
    tpu.vector_store %arg4[%c8, %c0_12], %7 {strides = array<i32>} : memref<72x384xf32, #tpu.memory_space<vmem>>, vector<4x128xf32>,
    %c0_13 = arith.constant 0 : index
    %c0_14 = arith.constant 0 : index
    %c0_15 = arith.constant 0 : index
    %c10 = arith.constant 10 : index
    %9 = vector.load %arg1[%c0_13, %c0_14, %c0_15, %c10] : memref<1x4x4x150xf32, #tpu.memory_space<vmem>>, vector<1x1x4x128xf32>
    %10 = vector.shape_cast %9 : vector<1x1x4x128xf32> to vector<4x128xf32>
    %c12 = arith.constant 12 : index
    %c0_16 = arith.constant 0 : index
    %11 = vector.load %arg4[%c12, %c0_16] : memref<72x384xf32, #tpu.memory_space<vmem>>, vector<4x128xf32>
    tpu.vector_store %arg4[%c12, %c0_16], %10 {strides = array<i32>} : memref<72x384xf32, #tpu.memory_space<vmem>>, vector<4x128xf32>,
    %c0_17 = arith.constant 0 : index
    %c0_18 = arith.constant 0 : index
    %c0_19 = arith.constant 0 : index
    %c11 = arith.constant 11 : index
    %12 = vector.load %arg1[%c0_17, %c0_18, %c0_19, %c11] : memref<1x4x4x150xf32, #tpu.memory_space<vmem>>, vector<1x1x4x128xf32>
    %13 = vector.shape_cast %12 : vector<1x1x4x128xf32> to vector<4x128xf32>
    %c16 = arith.constant 16 : index
    %c0_20 = arith.constant 0 : index
    %14 = vector.load %arg4[%c16, %c0_20] : memref<72x384xf32, #tpu.memory_space<vmem>>, vector<4x128xf32>
    tpu.vector_store %arg4[%c16, %c0_20], %13 {strides = array<i32>} : memref<72x384xf32, #tpu.memory_space<vmem>>, vector<4x128xf32>,
    %c0_21 = arith.constant 0 : index
    %c0_22 = arith.constant 0 : index
    %c0_23 = arith.constant 0 : index
    %c12_24 = arith.constant 12 : index
    %15 = vector.load %arg1[%c0_21, %c0_22, %c0_23, %c12_24] : memref<1x4x4x150xf32, #tpu.memory_space<vmem>>, vector<1x1x4x128xf32>
    %16 = vector.shape_cast %15 : vector<1x1x4x128xf32> to vector<4x128xf32>
    %c20 = arith.constant 20 : index
    %c0_25 = arith.constant 0 : index
    %17 = vector.load %arg4[%c20, %c0_25] : memref<72x384xf32, #tpu.memory_space<vmem>>, vector<4x128xf32>
    tpu.vector_store %arg4[%c20, %c0_25], %16 {strides = array<i32>} : memref<72x384xf32, #tpu.memory_space<vmem>>, vector<4x128xf32>,
    %c0_26 = arith.constant 0 : index
    %c0_27 = arith.constant 0 : index
    %c0_28 = arith.constant 0 : index
    %c20_29 = arith.constant 20 : index
    %18 = vector.load %arg1[%c0_26, %c0_27, %c0_28, %c20_29] : memref<1x4x4x150xf32, #tpu.memory_space<vmem>>, vector<1x1x4x128xf32>
    %19 = vector.shape_cast %18 : vector<1x1x4x128xf32> to vector<4x128xf32>
    %c24 = arith.constant 24 : index
    %c0_30 = arith.constant 0 : index
    %20 = vector.load %arg4[%c24, %c0_30] : memref<72x384xf32, #tpu.memory_space<vmem>>, vector<4x128xf32>
    tpu.vector_store %arg4[%c24, %c0_30], %19 {strides = array<i32>} : memref<72x384xf32, #tpu.memory_space<vmem>>, vector<4x128xf32>,
    %c0_31 = arith.constant 0 : index
    %c0_32 = arith.constant 0 : index
    %c0_33 = arith.constant 0 : index
    %c21 = arith.constant 21 : index
    %21 = vector.load %arg1[%c0_31, %c0_32, %c0_33, %c21] : memref<1x4x4x150xf32, #tpu.memory_space<vmem>>, vector<1x1x4x128xf32>
    %22 = vector.shape_cast %21 : vector<1x1x4x128xf32> to vector<4x128xf32>
    %c28 = arith.constant 28 : index
    %c0_34 = arith.constant 0 : index
    %23 = vector.load %arg4[%c28, %c0_34] : memref<72x384xf32, #tpu.memory_space<vmem>>, vector<4x128xf32>
    tpu.vector_store %arg4[%c28, %c0_34], %22 {strides = array<i32>} : memref<72x384xf32, #tpu.memory_space<vmem>>, vector<4x128xf32>,
    %c0_35 = arith.constant 0 : index
    %c0_36 = arith.constant 0 : index
    %c0_37 = arith.constant 0 : index
    %c22 = arith.constant 22 : index
    %24 = vector.load %arg1[%c0_35, %c0_36, %c0_37, %c22] : memref<1x4x4x150xf32, #tpu.memory_space<vmem>>, vector<1x1x4x128xf32>
    %25 = vector.shape_cast %24 : vector<1x1x4x128xf32> to vector<4x128xf32>
    %c32 = arith.constant 32 : index
    %c0_38 = arith.constant 0 : index
    %26 = vector.load %arg4[%c32, %c0_38] : memref<72x384xf32, #tpu.memory_space<vmem>>, vector<4x128xf32>
    tpu.vector_store %arg4[%c32, %c0_38], %25 {strides = array<i32>} : memref<72x384xf32, #tpu.memory_space<vmem>>, vector<4x128xf32>,
    %c0_39 = arith.constant 0 : index
    %c1_40 = arith.constant 1 : index
    %c0_41 = arith.constant 0 : index
    %c0_42 = arith.constant 0 : index
    %27 = vector.load %arg1[%c0_39, %c1_40, %c0_41, %c0_42] : memref<1x4x4x150xf32, #tpu.memory_space<vmem>>, vector<1x1x4x128xf32>
    %28 = vector.shape_cast %27 : vector<1x1x4x128xf32> to vector<4x128xf32>
    %c36 = arith.constant 36 : index
    %c0_43 = arith.constant 0 : index
    %29 = vector.load %arg4[%c36, %c0_43] : memref<72x384xf32, #tpu.memory_space<vmem>>, vector<4x128xf32>
    tpu.vector_store %arg4[%c36, %c0_43], %28 {strides = array<i32>} : memref<72x384xf32, #tpu.memory_space<vmem>>, vector<4x128xf32>,
    %c0_44 = arith.constant 0 : index
    %c1_45 = arith.constant 1 : index
    %c0_46 = arith.constant 0 : index
    %c1_47 = arith.constant 1 : index
    %30 = vector.load %arg1[%c0_44, %c1_45, %c0_46, %c1_47] : memref<1x4x4x150xf32, #tpu.memory_space<vmem>>, vector<1x1x4x128xf32>
    %31 = vector.shape_cast %30 : vector<1x1x4x128xf32> to vector<4x128xf32>
    %c40 = arith.constant 40 : index
    %c0_48 = arith.constant 0 : index
    %32 = vector.load %arg4[%c40, %c0_48] : memref<72x384xf32, #tpu.memory_space<vmem>>, vector<4x128xf32>
    tpu.vector_store %arg4[%c40, %c0_48], %31 {strides = array<i32>} : memref<72x384xf32, #tpu.memory_space<vmem>>, vector<4x128xf32>,
    %c0_49 = arith.constant 0 : index
    %c1_50 = arith.constant 1 : index
    %c0_51 = arith.constant 0 : index
    %c2_52 = arith.constant 2 : index
    %33 = vector.load %arg1[%c0_49, %c1_50, %c0_51, %c2_52] : memref<1x4x4x150xf32, #tpu.memory_space<vmem>>, vector<1x1x4x128xf32>
    %34 = vector.shape_cast %33 : vector<1x1x4x128xf32> to vector<4x128xf32>
    %c44 = arith.constant 44 : index
    %c0_53 = arith.constant 0 : index
    %35 = vector.load %arg4[%c44, %c0_53] : memref<72x384xf32, #tpu.memory_space<vmem>>, vector<4x128xf32>
    tpu.vector_store %arg4[%c44, %c0_53], %34 {strides = array<i32>} : memref<72x384xf32, #tpu.memory_space<vmem>>, vector<4x128xf32>,
    %c0_54 = arith.constant 0 : index
    %c1_55 = arith.constant 1 : index
    %c0_56 = arith.constant 0 : index
    %c10_57 = arith.constant 10 : index
    %36 = vector.load %arg1[%c0_54, %c1_55, %c0_56, %c10_57] : memref<1x4x4x150xf32, #tpu.memory_space<vmem>>, vector<1x1x4x128xf32>
    %37 = vector.shape_cast %36 : vector<1x1x4x128xf32> to vector<4x128xf32>
    %c48 = arith.constant 48 : index
    %c0_58 = arith.constant 0 : index
    %38 = vector.load %arg4[%c48, %c0_58] : memref<72x384xf32, #tpu.memory_space<vmem>>, vector<4x128xf32>
    tpu.vector_store %arg4[%c48, %c0_58], %37 {strides = array<i32>} : memref<72x384xf32, #tpu.memory_space<vmem>>, vector<4x128xf32>,
    %c0_59 = arith.constant 0 : index
    %c1_60 = arith.constant 1 : index
    %c0_61 = arith.constant 0 : index
    %c11_62 = arith.constant 11 : index
    %39 = vector.load %arg1[%c0_59, %c1_60, %c0_61, %c11_62] : memref<1x4x4x150xf32, #tpu.memory_space<vmem>>, vector<1x1x4x128xf32>
    %40 = vector.shape_cast %39 : vector<1x1x4x128xf32> to vector<4x128xf32>
    %c52 = arith.constant 52 : index
    %c0_63 = arith.constant 0 : index
    %41 = vector.load %arg4[%c52, %c0_63] : memref<72x384xf32, #tpu.memory_space<vmem>>, vector<4x128xf32>
    tpu.vector_store %arg4[%c52, %c0_63], %40 {strides = array<i32>} : memref<72x384xf32, #tpu.memory_space<vmem>>, vector<4x128xf32>,
    %c0_64 = arith.constant 0 : index
    %c1_65 = arith.constant 1 : index
    %c0_66 = arith.constant 0 : index
    %c12_67 = arith.constant 12 : index
    %42 = vector.load %arg1[%c0_64, %c1_65, %c0_66, %c12_67] : memref<1x4x4x150xf32, #tpu.memory_space<vmem>>, vector<1x1x4x128xf32>
    %43 = vector.shape_cast %42 : vector<1x1x4x128xf32> to vector<4x128xf32>
    %c56 = arith.constant 56 : index
    %c0_68 = arith.constant 0 : index
    %44 = vector.load %arg4[%c56, %c0_68] : memref<72x384xf32, #tpu.memory_space<vmem>>, vector<4x128xf32>
    tpu.vector_store %arg4[%c56, %c0_68], %43 {strides = array<i32>} : memref<72x384xf32, #tpu.memory_space<vmem>>, vector<4x128xf32>,
    %c0_69 = arith.constant 0 : index
    %c1_70 = arith.constant 1 : index
    %c0_71 = arith.constant 0 : index
    %c20_72 = arith.constant 20 : index
    %45 = vector.load %arg1[%c0_69, %c1_70, %c0_71, %c20_72] : memref<1x4x4x150xf32, #tpu.memory_space<vmem>>, vector<1x1x4x128xf32>
    %46 = vector.shape_cast %45 : vector<1x1x4x128xf32> to vector<4x128xf32>
    %c60 = arith.constant 60 : index
    %c0_73 = arith.constant 0 : index
    %47 = vector.load %arg4[%c60, %c0_73] : memref<72x384xf32, #tpu.memory_space<vmem>>, vector<4x128xf32>
    tpu.vector_store %arg4[%c60, %c0_73], %46 {strides = array<i32>} : memref<72x384xf32, #tpu.memory_space<vmem>>, vector<4x128xf32>,
    %c0_74 = arith.constant 0 : index
    %c1_75 = arith.constant 1 : index
    %c0_76 = arith.constant 0 : index
    %c21_77 = arith.constant 21 : index
    %48 = vector.load %arg1[%c0_74, %c1_75, %c0_76, %c21_77] : memref<1x4x4x150xf32, #tpu.memory_space<vmem>>, vector<1x1x4x128xf32>
    %49 = vector.shape_cast %48 : vector<1x1x4x128xf32> to vector<4x128xf32>
    %c64 = arith.constant 64 : index
    %c0_78 = arith.constant 0 : index
    %50 = vector.load %arg4[%c64, %c0_78] : memref<72x384xf32, #tpu.memory_space<vmem>>, vector<4x128xf32>
    tpu.vector_store %arg4[%c64, %c0_78], %49 {strides = array<i32>} : memref<72x384xf32, #tpu.memory_space<vmem>>, vector<4x128xf32>,
    %c0_79 = arith.constant 0 : index
    %c1_80 = arith.constant 1 : index
    %c0_81 = arith.constant 0 : index
    %c22_82 = arith.constant 22 : index
    %51 = vector.load %arg1[%c0_79, %c1_80, %c0_81, %c22_82] : memref<1x4x4x150xf32, #tpu.memory_space<vmem>>, vector<1x1x4x128xf32>
    %52 = vector.shape_cast %51 : vector<1x1x4x128xf32> to vector<4x128xf32>
    %c68 = arith.constant 68 : index
    %c0_83 = arith.constant 0 : index
    %53 = vector.load %arg4[%c68, %c0_83] : memref<72x384xf32, #tpu.memory_space<vmem>>, vector<4x128xf32>
    tpu.vector_store %arg4[%c68, %c0_83], %52 {strides = array<i32>} : memref<72x384xf32, #tpu.memory_space<vmem>>, vector<4x128xf32>,
    %c0_84 = arith.constant 0 : index
    %c1_85 = arith.constant 1 : index
    %c0_86 = arith.constant 0 : index
    %c0_87 = arith.constant 0 : index
    %54 = vector.load %arg1[%c0_84, %c1_85, %c0_86, %c0_87] : memref<1x4x4x150xf32, #tpu.memory_space<vmem>>, vector<1x1x4x128xf32>
    %55 = vector.shape_cast %54 : vector<1x1x4x128xf32> to vector<4x128xf32>
    %c0_88 = arith.constant 0 : index
    %c128 = arith.constant 128 : index
    %56 = vector.load %arg4[%c0_88, %c128] : memref<72x384xf32, #tpu.memory_space<vmem>>, vector<4x128xf32>
    tpu.vector_store %arg4[%c0_88, %c128], %55 {strides = array<i32>} : memref<72x384xf32, #tpu.memory_space<vmem>>, vector<4x128xf32>,
    %c0_89 = arith.constant 0 : index
    %c1_90 = arith.constant 1 : index
    %c0_91 = arith.constant 0 : index
    %c1_92 = arith.constant 1 : index
    %57 = vector.load %arg1[%c0_89, %c1_90, %c0_91, %c1_92] : memref<1x4x4x150xf32, #tpu.memory_space<vmem>>, vector<1x1x4x128xf32>
    %58 = vector.shape_cast %57 : vector<1x1x4x128xf32> to vector<4x128xf32>
    %c4_93 = arith.constant 4 : index
    %c128_94 = arith.constant 128 : index
    %59 = vector.load %arg4[%c4_93, %c128_94] : memref<72x384xf32, #tpu.memory_space<vmem>>, vector<4x128xf32>
    tpu.vector_store %arg4[%c4_93, %c128_94], %58 {strides = array<i32>} : memref<72x384xf32, #tpu.memory_space<vmem>>, vector<4x128xf32>,
    %c0_95 = arith.constant 0 : index
    %c1_96 = arith.constant 1 : index
    %c0_97 = arith.constant 0 : index
    %c2_98 = arith.constant 2 : index
    %60 = vector.load %arg1[%c0_95, %c1_96, %c0_97, %c2_98] : memref<1x4x4x150xf32, #tpu.memory_space<vmem>>, vector<1x1x4x128xf32>
    %61 = vector.shape_cast %60 : vector<1x1x4x128xf32> to vector<4x128xf32>
    %c8_99 = arith.constant 8 : index
    %c128_100 = arith.constant 128 : index
    %62 = vector.load %arg4[%c8_99, %c128_100] : memref<72x384xf32, #tpu.memory_space<vmem>>, vector<4x128xf32>
    tpu.vector_store %arg4[%c8_99, %c128_100], %61 {strides = array<i32>} : memref<72x384xf32, #tpu.memory_space<vmem>>, vector<4x128xf32>,
    %c0_101 = arith.constant 0 : index
    %c1_102 = arith.constant 1 : index
    %c0_103 = arith.constant 0 : index
    %c10_104 = arith.constant 10 : index
    %63 = vector.load %arg1[%c0_101, %c1_102, %c0_103, %c10_104] : memref<1x4x4x150xf32, #tpu.memory_space<vmem>>, vector<1x1x4x128xf32>
    %64 = vector.shape_cast %63 : vector<1x1x4x128xf32> to vector<4x128xf32>
    %c12_105 = arith.constant 12 : index
    %c128_106 = arith.constant 128 : index
    %65 = vector.load %arg4[%c12_105, %c128_106] : memref<72x384xf32, #tpu.memory_space<vmem>>, vector<4x128xf32>
    tpu.vector_store %arg4[%c12_105, %c128_106], %64 {strides = array<i32>} : memref<72x384xf32, #tpu.memory_space<vmem>>, vector<4x128xf32>,
    %c0_107 = arith.constant 0 : index
    %c1_108 = arith.constant 1 : index
    %c0_109 = arith.constant 0 : index
    %c11_110 = arith.constant 11 : index
    %66 = vector.load %arg1[%c0_107, %c1_108, %c0_109, %c11_110] : memref<1x4x4x150xf32, #tpu.memory_space<vmem>>, vector<1x1x4x128xf32>
    %67 = vector.shape_cast %66 : vector<1x1x4x128xf32> to vector<4x128xf32>
    %c16_111 = arith.constant 16 : index
    %c128_112 = arith.constant 128 : index
    %68 = vector.load %arg4[%c16_111, %c128_112] : memref<72x384xf32, #tpu.memory_space<vmem>>, vector<4x128xf32>
    tpu.vector_store %arg4[%c16_111, %c128_112], %67 {strides = array<i32>} : memref<72x384xf32, #tpu.memory_space<vmem>>, vector<4x128xf32>,
    %c0_113 = arith.constant 0 : index
    %c1_114 = arith.constant 1 : index
    %c0_115 = arith.constant 0 : index
    %c12_116 = arith.constant 12 : index
    %69 = vector.load %arg1[%c0_113, %c1_114, %c0_115, %c12_116] : memref<1x4x4x150xf32, #tpu.memory_space<vmem>>, vector<1x1x4x128xf32>
    %70 = vector.shape_cast %69 : vector<1x1x4x128xf32> to vector<4x128xf32>
    %c20_117 = arith.constant 20 : index
    %c128_118 = arith.constant 128 : index
    %71 = vector.load %arg4[%c20_117, %c128_118] : memref<72x384xf32, #tpu.memory_space<vmem>>, vector<4x128xf32>
    tpu.vector_store %arg4[%c20_117, %c128_118], %70 {strides = array<i32>} : memref<72x384xf32, #tpu.memory_space<vmem>>, vector<4x128xf32>,
    %c0_119 = arith.constant 0 : index
    %c1_120 = arith.constant 1 : index
    %c0_121 = arith.constant 0 : index
    %c20_122 = arith.constant 20 : index
    %72 = vector.load %arg1[%c0_119, %c1_120, %c0_121, %c20_122] : memref<1x4x4x150xf32, #tpu.memory_space<vmem>>, vector<1x1x4x128xf32>
    %73 = vector.shape_cast %72 : vector<1x1x4x128xf32> to vector<4x128xf32>
    %c24_123 = arith.constant 24 : index
    %c128_124 = arith.constant 128 : index
    %74 = vector.load %arg4[%c24_123, %c128_124] : memref<72x384xf32, #tpu.memory_space<vmem>>, vector<4x128xf32>
    tpu.vector_store %arg4[%c24_123, %c128_124], %73 {strides = array<i32>} : memref<72x384xf32, #tpu.memory_space<vmem>>, vector<4x128xf32>,
    %c0_125 = arith.constant 0 : index
    %c1_126 = arith.constant 1 : index
    %c0_127 = arith.constant 0 : index
    %c21_128 = arith.constant 21 : index
    %75 = vector.load %arg1[%c0_125, %c1_126, %c0_127, %c21_128] : memref<1x4x4x150xf32, #tpu.memory_space<vmem>>, vector<1x1x4x128xf32>
    %76 = vector.shape_cast %75 : vector<1x1x4x128xf32> to vector<4x128xf32>
    %c28_129 = arith.constant 28 : index
    %c128_130 = arith.constant 128 : index
    %77 = vector.load %arg4[%c28_129, %c128_130] : memref<72x384xf32, #tpu.memory_space<vmem>>, vector<4x128xf32>
    tpu.vector_store %arg4[%c28_129, %c128_130], %76 {strides = array<i32>} : memref<72x384xf32, #tpu.memory_space<vmem>>, vector<4x128xf32>,
    %c0_131 = arith.constant 0 : index
    %c1_132 = arith.constant 1 : index
    %c0_133 = arith.constant 0 : index
    %c22_134 = arith.constant 22 : index
    %78 = vector.load %arg1[%c0_131, %c1_132, %c0_133, %c22_134] : memref<1x4x4x150xf32, #tpu.memory_space<vmem>>, vector<1x1x4x128xf32>
    %79 = vector.shape_cast %78 : vector<1x1x4x128xf32> to vector<4x128xf32>
    %c32_135 = arith.constant 32 : index
    %c128_136 = arith.constant 128 : index
    %80 = vector.load %arg4[%c32_135, %c128_136] : memref<72x384xf32, #tpu.memory_space<vmem>>, vector<4x128xf32>
    tpu.vector_store %arg4[%c32_135, %c128_136], %79 {strides = array<i32>} : memref<72x384xf32, #tpu.memory_space<vmem>>, vector<4x128xf32>,
    %c0_137 = arith.constant 0 : index
    %c2_138 = arith.constant 2 : index
    %c0_139 = arith.constant 0 : index
    %c0_140 = arith.constant 0 : index
    %81 = vector.load %arg1[%c0_137, %c2_138, %c0_139, %c0_140] : memref<1x4x4x150xf32, #tpu.memory_space<vmem>>, vector<1x1x4x128xf32>
    %82 = vector.shape_cast %81 : vector<1x1x4x128xf32> to vector<4x128xf32>
    %c36_141 = arith.constant 36 : index
    %c128_142 = arith.constant 128 : index
    %83 = vector.load %arg4[%c36_141, %c128_142] : memref<72x384xf32, #tpu.memory_space<vmem>>, vector<4x128xf32>
    tpu.vector_store %arg4[%c36_141, %c128_142], %82 {strides = array<i32>} : memref<72x384xf32, #tpu.memory_space<vmem>>, vector<4x128xf32>,
    %c0_143 = arith.constant 0 : index
    %c2_144 = arith.constant 2 : index
    %c0_145 = arith.constant 0 : index
    %c1_146 = arith.constant 1 : index
    %84 = vector.load %arg1[%c0_143, %c2_144, %c0_145, %c1_146] : memref<1x4x4x150xf32, #tpu.memory_space<vmem>>, vector<1x1x4x128xf32>
    %85 = vector.shape_cast %84 : vector<1x1x4x128xf32> to vector<4x128xf32>
    %c40_147 = arith.constant 40 : index
    %c128_148 = arith.constant 128 : index
    %86 = vector.load %arg4[%c40_147, %c128_148] : memref<72x384xf32, #tpu.memory_space<vmem>>, vector<4x128xf32>
    tpu.vector_store %arg4[%c40_147, %c128_148], %85 {strides = array<i32>} : memref<72x384xf32, #tpu.memory_space<vmem>>, vector<4x128xf32>,
    %c0_149 = arith.constant 0 : index
    %c2_150 = arith.constant 2 : index
    %c0_151 = arith.constant 0 : index
    %c2_152 = arith.constant 2 : index
    %87 = vector.load %arg1[%c0_149, %c2_150, %c0_151, %c2_152] : memref<1x4x4x150xf32, #tpu.memory_space<vmem>>, vector<1x1x4x128xf32>
    %88 = vector.shape_cast %87 : vector<1x1x4x128xf32> to vector<4x128xf32>
    %c44_153 = arith.constant 44 : index
    %c128_154 = arith.constant 128 : index
    %89 = vector.load %arg4[%c44_153, %c128_154] : memref<72x384xf32, #tpu.memory_space<vmem>>, vector<4x128xf32>
    tpu.vector_store %arg4[%c44_153, %c128_154], %88 {strides = array<i32>} : memref<72x384xf32, #tpu.memory_space<vmem>>, vector<4x128xf32>,
    %c0_155 = arith.constant 0 : index
    %c2_156 = arith.constant 2 : index
    %c0_157 = arith.constant 0 : index
    %c10_158 = arith.constant 10 : index
    %90 = vector.load %arg1[%c0_155, %c2_156, %c0_157, %c10_158] : memref<1x4x4x150xf32, #tpu.memory_space<vmem>>, vector<1x1x4x128xf32>
    %91 = vector.shape_cast %90 : vector<1x1x4x128xf32> to vector<4x128xf32>
    %c48_159 = arith.constant 48 : index
    %c128_160 = arith.constant 128 : index
    %92 = vector.load %arg4[%c48_159, %c128_160] : memref<72x384xf32, #tpu.memory_space<vmem>>, vector<4x128xf32>
    tpu.vector_store %arg4[%c48_159, %c128_160], %91 {strides = array<i32>} : memref<72x384xf32, #tpu.memory_space<vmem>>, vector<4x128xf32>,
    %c0_161 = arith.constant 0 : index
    %c2_162 = arith.constant 2 : index
    %c0_163 = arith.constant 0 : index
    %c11_164 = arith.constant 11 : index
    %93 = vector.load %arg1[%c0_161, %c2_162, %c0_163, %c11_164] : memref<1x4x4x150xf32, #tpu.memory_space<vmem>>, vector<1x1x4x128xf32>
    %94 = vector.shape_cast %93 : vector<1x1x4x128xf32> to vector<4x128xf32>
    %c52_165 = arith.constant 52 : index
    %c128_166 = arith.constant 128 : index
    %95 = vector.load %arg4[%c52_165, %c128_166] : memref<72x384xf32, #tpu.memory_space<vmem>>, vector<4x128xf32>
    tpu.vector_store %arg4[%c52_165, %c128_166], %94 {strides = array<i32>} : memref<72x384xf32, #tpu.memory_space<vmem>>, vector<4x128xf32>,
    %c0_167 = arith.constant 0 : index
    %c2_168 = arith.constant 2 : index
    %c0_169 = arith.constant 0 : index
    %c12_170 = arith.constant 12 : index
    %96 = vector.load %arg1[%c0_167, %c2_168, %c0_169, %c12_170] : memref<1x4x4x150xf32, #tpu.memory_space<vmem>>, vector<1x1x4x128xf32>
    %97 = vector.shape_cast %96 : vector<1x1x4x128xf32> to vector<4x128xf32>
    %c56_171 = arith.constant 56 : index
    %c128_172 = arith.constant 128 : index
    %98 = vector.load %arg4[%c56_171, %c128_172] : memref<72x384xf32, #tpu.memory_space<vmem>>, vector<4x128xf32>
    tpu.vector_store %arg4[%c56_171, %c128_172], %97 {strides = array<i32>} : memref<72x384xf32, #tpu.memory_space<vmem>>, vector<4x128xf32>,
    %c0_173 = arith.constant 0 : index
    %c2_174 = arith.constant 2 : index
    %c0_175 = arith.constant 0 : index
    %c20_176 = arith.constant 20 : index
    %99 = vector.load %arg1[%c0_173, %c2_174, %c0_175, %c20_176] : memref<1x4x4x150xf32, #tpu.memory_space<vmem>>, vector<1x1x4x128xf32>
    %100 = vector.shape_cast %99 : vector<1x1x4x128xf32> to vector<4x128xf32>
    %c60_177 = arith.constant 60 : index
    %c128_178 = arith.constant 128 : index
    %101 = vector.load %arg4[%c60_177, %c128_178] : memref<72x384xf32, #tpu.memory_space<vmem>>, vector<4x128xf32>
    tpu.vector_store %arg4[%c60_177, %c128_178], %100 {strides = array<i32>} : memref<72x384xf32, #tpu.memory_space<vmem>>, vector<4x128xf32>,
    %c0_179 = arith.constant 0 : index
    %c2_180 = arith.constant 2 : index
    %c0_181 = arith.constant 0 : index
    %c21_182 = arith.constant 21 : index
    %102 = vector.load %arg1[%c0_179, %c2_180, %c0_181, %c21_182] : memref<1x4x4x150xf32, #tpu.memory_space<vmem>>, vector<1x1x4x128xf32>
    %103 = vector.shape_cast %102 : vector<1x1x4x128xf32> to vector<4x128xf32>
    %c64_183 = arith.constant 64 : index
    %c128_184 = arith.constant 128 : index
    %104 = vector.load %arg4[%c64_183, %c128_184] : memref<72x384xf32, #tpu.memory_space<vmem>>, vector<4x128xf32>
    tpu.vector_store %arg4[%c64_183, %c128_184], %103 {strides = array<i32>} : memref<72x384xf32, #tpu.memory_space<vmem>>, vector<4x128xf32>,
    %c0_185 = arith.constant 0 : index
    %c2_186 = arith.constant 2 : index
    %c0_187 = arith.constant 0 : index
    %c22_188 = arith.constant 22 : index
    %105 = vector.load %arg1[%c0_185, %c2_186, %c0_187, %c22_188] : memref<1x4x4x150xf32, #tpu.memory_space<vmem>>, vector<1x1x4x128xf32>
    %106 = vector.shape_cast %105 : vector<1x1x4x128xf32> to vector<4x128xf32>
    %c68_189 = arith.constant 68 : index
    %c128_190 = arith.constant 128 : index
    %107 = vector.load %arg4[%c68_189, %c128_190] : memref<72x384xf32, #tpu.memory_space<vmem>>, vector<4x128xf32>
    tpu.vector_store %arg4[%c68_189, %c128_190], %106 {strides = array<i32>} : memref<72x384xf32, #tpu.memory_space<vmem>>, vector<4x128xf32>,
    %c0_191 = arith.constant 0 : index
    %c2_192 = arith.constant 2 : index
    %c0_193 = arith.constant 0 : index
    %c0_194 = arith.constant 0 : index
    %108 = vector.load %arg1[%c0_191, %c2_192, %c0_193, %c0_194] : memref<1x4x4x150xf32, #tpu.memory_space<vmem>>, vector<1x1x4x128xf32>
    %109 = vector.shape_cast %108 : vector<1x1x4x128xf32> to vector<4x128xf32>
    %c0_195 = arith.constant 0 : index
    %c256 = arith.constant 256 : index
    %110 = vector.load %arg4[%c0_195, %c256] : memref<72x384xf32, #tpu.memory_space<vmem>>, vector<4x128xf32>
    tpu.vector_store %arg4[%c0_195, %c256], %109 {strides = array<i32>} : memref<72x384xf32, #tpu.memory_space<vmem>>, vector<4x128xf32>,
    %c0_196 = arith.constant 0 : index
    %c2_197 = arith.constant 2 : index
    %c0_198 = arith.constant 0 : index
    %c1_199 = arith.constant 1 : index
    %111 = vector.load %arg1[%c0_196, %c2_197, %c0_198, %c1_199] : memref<1x4x4x150xf32, #tpu.memory_space<vmem>>, vector<1x1x4x128xf32>
    %112 = vector.shape_cast %111 : vector<1x1x4x128xf32> to vector<4x128xf32>
    %c4_200 = arith.constant 4 : index
    %c256_201 = arith.constant 256 : index
    %113 = vector.load %arg4[%c4_200, %c256_201] : memref<72x384xf32, #tpu.memory_space<vmem>>, vector<4x128xf32>
    tpu.vector_store %arg4[%c4_200, %c256_201], %112 {strides = array<i32>} : memref<72x384xf32, #tpu.memory_space<vmem>>, vector<4x128xf32>,
    %c0_202 = arith.constant 0 : index
    %c2_203 = arith.constant 2 : index
    %c0_204 = arith.constant 0 : index
    %c2_205 = arith.constant 2 : index
    %114 = vector.load %arg1[%c0_202, %c2_203, %c0_204, %c2_205] : memref<1x4x4x150xf32, #tpu.memory_space<vmem>>, vector<1x1x4x128xf32>
    %115 = vector.shape_cast %114 : vector<1x1x4x128xf32> to vector<4x128xf32>
    %c8_206 = arith.constant 8 : index
    %c256_207 = arith.constant 256 : index
    %116 = vector.load %arg4[%c8_206, %c256_207] : memref<72x384xf32, #tpu.memory_space<vmem>>, vector<4x128xf32>
    tpu.vector_store %arg4[%c8_206, %c256_207], %115 {strides = array<i32>} : memref<72x384xf32, #tpu.memory_space<vmem>>, vector<4x128xf32>,
    %c0_208 = arith.constant 0 : index
    %c2_209 = arith.constant 2 : index
    %c0_210 = arith.constant 0 : index
    %c10_211 = arith.constant 10 : index
    %117 = vector.load %arg1[%c0_208, %c2_209, %c0_210, %c10_211] : memref<1x4x4x150xf32, #tpu.memory_space<vmem>>, vector<1x1x4x128xf32>
    %118 = vector.shape_cast %117 : vector<1x1x4x128xf32> to vector<4x128xf32>
    %c12_212 = arith.constant 12 : index
    %c256_213 = arith.constant 256 : index
    %119 = vector.load %arg4[%c12_212, %c256_213] : memref<72x384xf32, #tpu.memory_space<vmem>>, vector<4x128xf32>
    tpu.vector_store %arg4[%c12_212, %c256_213], %118 {strides = array<i32>} : memref<72x384xf32, #tpu.memory_space<vmem>>, vector<4x128xf32>,
    %c0_214 = arith.constant 0 : index
    %c2_215 = arith.constant 2 : index
    %c0_216 = arith.constant 0 : index
    %c11_217 = arith.constant 11 : index
    %120 = vector.load %arg1[%c0_214, %c2_215, %c0_216, %c11_217] : memref<1x4x4x150xf32, #tpu.memory_space<vmem>>, vector<1x1x4x128xf32>
    %121 = vector.shape_cast %120 : vector<1x1x4x128xf32> to vector<4x128xf32>
    %c16_218 = arith.constant 16 : index
    %c256_219 = arith.constant 256 : index
    %122 = vector.load %arg4[%c16_218, %c256_219] : memref<72x384xf32, #tpu.memory_space<vmem>>, vector<4x128xf32>
    tpu.vector_store %arg4[%c16_218, %c256_219], %121 {strides = array<i32>} : memref<72x384xf32, #tpu.memory_space<vmem>>, vector<4x128xf32>,
    %c0_220 = arith.constant 0 : index
    %c2_221 = arith.constant 2 : index
    %c0_222 = arith.constant 0 : index
    %c12_223 = arith.constant 12 : index
    %123 = vector.load %arg1[%c0_220, %c2_221, %c0_222, %c12_223] : memref<1x4x4x150xf32, #tpu.memory_space<vmem>>, vector<1x1x4x128xf32>
    %124 = vector.shape_cast %123 : vector<1x1x4x128xf32> to vector<4x128xf32>
    %c20_224 = arith.constant 20 : index
    %c256_225 = arith.constant 256 : index
    %125 = vector.load %arg4[%c20_224, %c256_225] : memref<72x384xf32, #tpu.memory_space<vmem>>, vector<4x128xf32>
    tpu.vector_store %arg4[%c20_224, %c256_225], %124 {strides = array<i32>} : memref<72x384xf32, #tpu.memory_space<vmem>>, vector<4x128xf32>,
    %c0_226 = arith.constant 0 : index
    %c2_227 = arith.constant 2 : index
    %c0_228 = arith.constant 0 : index
    %c20_229 = arith.constant 20 : index
    %126 = vector.load %arg1[%c0_226, %c2_227, %c0_228, %c20_229] : memref<1x4x4x150xf32, #tpu.memory_space<vmem>>, vector<1x1x4x128xf32>
    %127 = vector.shape_cast %126 : vector<1x1x4x128xf32> to vector<4x128xf32>
    %c24_230 = arith.constant 24 : index
    %c256_231 = arith.constant 256 : index
    %128 = vector.load %arg4[%c24_230, %c256_231] : memref<72x384xf32, #tpu.memory_space<vmem>>, vector<4x128xf32>
    tpu.vector_store %arg4[%c24_230, %c256_231], %127 {strides = array<i32>} : memref<72x384xf32, #tpu.memory_space<vmem>>, vector<4x128xf32>,
    %c0_232 = arith.constant 0 : index
    %c2_233 = arith.constant 2 : index
    %c0_234 = arith.constant 0 : index
    %c21_235 = arith.constant 21 : index
    %129 = vector.load %arg1[%c0_232, %c2_233, %c0_234, %c21_235] : memref<1x4x4x150xf32, #tpu.memory_space<vmem>>, vector<1x1x4x128xf32>
    %130 = vector.shape_cast %129 : vector<1x1x4x128xf32> to vector<4x128xf32>
    %c28_236 = arith.constant 28 : index
    %c256_237 = arith.constant 256 : index
    %131 = vector.load %arg4[%c28_236, %c256_237] : memref<72x384xf32, #tpu.memory_space<vmem>>, vector<4x128xf32>
    tpu.vector_store %arg4[%c28_236, %c256_237], %130 {strides = array<i32>} : memref<72x384xf32, #tpu.memory_space<vmem>>, vector<4x128xf32>,
    %c0_238 = arith.constant 0 : index
    %c2_239 = arith.constant 2 : index
    %c0_240 = arith.constant 0 : index
    %c22_241 = arith.constant 22 : index
    %132 = vector.load %arg1[%c0_238, %c2_239, %c0_240, %c22_241] : memref<1x4x4x150xf32, #tpu.memory_space<vmem>>, vector<1x1x4x128xf32>
    %133 = vector.shape_cast %132 : vector<1x1x4x128xf32> to vector<4x128xf32>
    %c32_242 = arith.constant 32 : index
    %c256_243 = arith.constant 256 : index
    %134 = vector.load %arg4[%c32_242, %c256_243] : memref<72x384xf32, #tpu.memory_space<vmem>>, vector<4x128xf32>
    tpu.vector_store %arg4[%c32_242, %c256_243], %133 {strides = array<i32>} : memref<72x384xf32, #tpu.memory_space<vmem>>, vector<4x128xf32>,
    %c0_244 = arith.constant 0 : index
    %c3 = arith.constant 3 : index
    %c0_245 = arith.constant 0 : index
    %c0_246 = arith.constant 0 : index
    %135 = vector.load %arg1[%c0_244, %c3, %c0_245, %c0_246] : memref<1x4x4x150xf32, #tpu.memory_space<vmem>>, vector<1x1x4x128xf32>
    %136 = vector.shape_cast %135 : vector<1x1x4x128xf32> to vector<4x128xf32>
    %c36_247 = arith.constant 36 : index
    %c256_248 = arith.constant 256 : index
    %137 = vector.load %arg4[%c36_247, %c256_248] : memref<72x384xf32, #tpu.memory_space<vmem>>, vector<4x128xf32>
    tpu.vector_store %arg4[%c36_247, %c256_248], %136 {strides = array<i32>} : memref<72x384xf32, #tpu.memory_space<vmem>>, vector<4x128xf32>,
    %c0_249 = arith.constant 0 : index
    %c3_250 = arith.constant 3 : index
    %c0_251 = arith.constant 0 : index
    %c1_252 = arith.constant 1 : index
    %138 = vector.load %arg1[%c0_249, %c3_250, %c0_251, %c1_252] : memref<1x4x4x150xf32, #tpu.memory_space<vmem>>, vector<1x1x4x128xf32>
    %139 = vector.shape_cast %138 : vector<1x1x4x128xf32> to vector<4x128xf32>
    %c40_253 = arith.constant 40 : index
    %c256_254 = arith.constant 256 : index
    %140 = vector.load %arg4[%c40_253, %c256_254] : memref<72x384xf32, #tpu.memory_space<vmem>>, vector<4x128xf32>
    tpu.vector_store %arg4[%c40_253, %c256_254], %139 {strides = array<i32>} : memref<72x384xf32, #tpu.memory_space<vmem>>, vector<4x128xf32>,
    %c0_255 = arith.constant 0 : index
    %c3_256 = arith.constant 3 : index
    %c0_257 = arith.constant 0 : index
    %c2_258 = arith.constant 2 : index
    %141 = vector.load %arg1[%c0_255, %c3_256, %c0_257, %c2_258] : memref<1x4x4x150xf32, #tpu.memory_space<vmem>>, vector<1x1x4x128xf32>
    %142 = vector.shape_cast %141 : vector<1x1x4x128xf32> to vector<4x128xf32>
    %c44_259 = arith.constant 44 : index
    %c256_260 = arith.constant 256 : index
    %143 = vector.load %arg4[%c44_259, %c256_260] : memref<72x384xf32, #tpu.memory_space<vmem>>, vector<4x128xf32>
    tpu.vector_store %arg4[%c44_259, %c256_260], %142 {strides = array<i32>} : memref<72x384xf32, #tpu.memory_space<vmem>>, vector<4x128xf32>,
    %c0_261 = arith.constant 0 : index
    %c3_262 = arith.constant 3 : index
    %c0_263 = arith.constant 0 : index
    %c10_264 = arith.constant 10 : index
    %144 = vector.load %arg1[%c0_261, %c3_262, %c0_263, %c10_264] : memref<1x4x4x150xf32, #tpu.memory_space<vmem>>, vector<1x1x4x128xf32>
    %145 = vector.shape_cast %144 : vector<1x1x4x128xf32> to vector<4x128xf32>
    %c48_265 = arith.constant 48 : index
    %c256_266 = arith.constant 256 : index
    %146 = vector.load %arg4[%c48_265, %c256_266] : memref<72x384xf32, #tpu.memory_space<vmem>>, vector<4x128xf32>
    tpu.vector_store %arg4[%c48_265, %c256_266], %145 {strides = array<i32>} : memref<72x384xf32, #tpu.memory_space<vmem>>, vector<4x128xf32>,
    %c0_267 = arith.constant 0 : index
    %c3_268 = arith.constant 3 : index
    %c0_269 = arith.constant 0 : index
    %c11_270 = arith.constant 11 : index
    %147 = vector.load %arg1[%c0_267, %c3_268, %c0_269, %c11_270] : memref<1x4x4x150xf32, #tpu.memory_space<vmem>>, vector<1x1x4x128xf32>
    %148 = vector.shape_cast %147 : vector<1x1x4x128xf32> to vector<4x128xf32>
    %c52_271 = arith.constant 52 : index
    %c256_272 = arith.constant 256 : index
    %149 = vector.load %arg4[%c52_271, %c256_272] : memref<72x384xf32, #tpu.memory_space<vmem>>, vector<4x128xf32>
    tpu.vector_store %arg4[%c52_271, %c256_272], %148 {strides = array<i32>} : memref<72x384xf32, #tpu.memory_space<vmem>>, vector<4x128xf32>,
    %c0_273 = arith.constant 0 : index
    %c3_274 = arith.constant 3 : index
    %c0_275 = arith.constant 0 : index
    %c12_276 = arith.constant 12 : index
    %150 = vector.load %arg1[%c0_273, %c3_274, %c0_275, %c12_276] : memref<1x4x4x150xf32, #tpu.memory_space<vmem>>, vector<1x1x4x128xf32>
    %151 = vector.shape_cast %150 : vector<1x1x4x128xf32> to vector<4x128xf32>
    %c56_277 = arith.constant 56 : index
    %c256_278 = arith.constant 256 : index
    %152 = vector.load %arg4[%c56_277, %c256_278] : memref<72x384xf32, #tpu.memory_space<vmem>>, vector<4x128xf32>
    tpu.vector_store %arg4[%c56_277, %c256_278], %151 {strides = array<i32>} : memref<72x384xf32, #tpu.memory_space<vmem>>, vector<4x128xf32>,
    %c0_279 = arith.constant 0 : index
    %c3_280 = arith.constant 3 : index
    %c0_281 = arith.constant 0 : index
    %c20_282 = arith.constant 20 : index
    %153 = vector.load %arg1[%c0_279, %c3_280, %c0_281, %c20_282] : memref<1x4x4x150xf32, #tpu.memory_space<vmem>>, vector<1x1x4x128xf32>
    %154 = vector.shape_cast %153 : vector<1x1x4x128xf32> to vector<4x128xf32>
    %c60_283 = arith.constant 60 : index
    %c256_284 = arith.constant 256 : index
    %155 = vector.load %arg4[%c60_283, %c256_284] : memref<72x384xf32, #tpu.memory_space<vmem>>, vector<4x128xf32>
    tpu.vector_store %arg4[%c60_283, %c256_284], %154 {strides = array<i32>} : memref<72x384xf32, #tpu.memory_space<vmem>>, vector<4x128xf32>,
    %c0_285 = arith.constant 0 : index
    %c3_286 = arith.constant 3 : index
    %c0_287 = arith.constant 0 : index
    %c21_288 = arith.constant 21 : index
    %156 = vector.load %arg1[%c0_285, %c3_286, %c0_287, %c21_288] : memref<1x4x4x150xf32, #tpu.memory_space<vmem>>, vector<1x1x4x128xf32>
    %157 = vector.shape_cast %156 : vector<1x1x4x128xf32> to vector<4x128xf32>
    %c64_289 = arith.constant 64 : index
    %c256_290 = arith.constant 256 : index
    %158 = vector.load %arg4[%c64_289, %c256_290] : memref<72x384xf32, #tpu.memory_space<vmem>>, vector<4x128xf32>
    tpu.vector_store %arg4[%c64_289, %c256_290], %157 {strides = array<i32>} : memref<72x384xf32, #tpu.memory_space<vmem>>, vector<4x128xf32>,
    %c0_291 = arith.constant 0 : index
    %c3_292 = arith.constant 3 : index
    %c0_293 = arith.constant 0 : index
    %c22_294 = arith.constant 22 : index
    %159 = vector.load %arg1[%c0_291, %c3_292, %c0_293, %c22_294] : memref<1x4x4x150xf32, #tpu.memory_space<vmem>>, vector<1x1x4x128xf32>
    %160 = vector.shape_cast %159 : vector<1x1x4x128xf32> to vector<4x128xf32>
    %c68_295 = arith.constant 68 : index
    %c256_296 = arith.constant 256 : index
    %161 = vector.load %arg4[%c68_295, %c256_296] : memref<72x384xf32, #tpu.memory_space<vmem>>, vector<4x128xf32>
    tpu.vector_store %arg4[%c68_295, %c256_296], %160 {strides = array<i32>} : memref<72x384xf32, #tpu.memory_space<vmem>>, vector<4x128xf32>,
    %c0_297 = arith.constant 0 : index
    %c0_298 = arith.constant 0 : index
    %162 = vector.load %arg2[%c0_297, %c0_298] : memref<8x72xf32, #tpu.memory_space<vmem>>, vector<8x72xf32>
    %c0_299 = arith.constant 0 : index
    %c0_300 = arith.constant 0 : index
    %163 = vector.load %arg4[%c0_299, %c0_300] : memref<72x384xf32, #tpu.memory_space<vmem>>, vector<72x384xf32>
    %cst = arith.constant dense<0.000000e+00> : vector<8x384xf32>
    %164 = tpu.matmul %162, %163, %cst {dimension_numbers = #tpu.dot_dimension_numbers<[1], [0], [0], [1], [0, 0, 1, 1], [], []>} : vector<8x72xf32>, vector<72x384xf32>, vector<8x384xf32> -> vector<8x384xf32>
    %165 = vector.extract_strided_slice %164 {offsets = [0, 0], sizes = [8, 128], strides = [1, 1]} : vector<8x384xf32> to vector<8x128xf32>
    %c0_301 = arith.constant 0 : index
    %c0_302 = arith.constant 0 : index
    %c0_303 = arith.constant 0 : index
    %166 = vector.load %arg3[%c0_301, %c0_302, %c0_303] : memref<1x8x512xf32, #tpu.memory_space<vmem>>, vector<1x8x128xf32>
    %167 = vector.shape_cast %166 : vector<1x8x128xf32> to vector<8x128xf32>
    %168 = vector.shape_cast %165 : vector<8x128xf32> to vector<1x8x128xf32>
    tpu.vector_store %arg3[%c0_301, %c0_302, %c0_303], %168 {strides = array<i32>} : memref<1x8x512xf32, #tpu.memory_space<vmem>>, vector<1x8x128xf32>,
    %169 = vector.extract_strided_slice %164 {offsets = [0, 0], sizes = [8, 128], strides = [1, 1]} : vector<8x384xf32> to vector<8x128xf32>
    %c0_304 = arith.constant 0 : index
    %c0_305 = arith.constant 0 : index
    %c128_306 = arith.constant 128 : index
    %170 = vector.load %arg3[%c0_304, %c0_305, %c128_306] : memref<1x8x512xf32, #tpu.memory_space<vmem>>, vector<1x8x128xf32>
    %171 = vector.shape_cast %170 : vector<1x8x128xf32> to vector<8x128xf32>
    %172 = vector.shape_cast %169 : vector<8x128xf32> to vector<1x8x128xf32>
    tpu.vector_store %arg3[%c0_304, %c0_305, %c128_306], %172 {strides = array<i32>} : memref<1x8x512xf32, #tpu.memory_space<vmem>>, vector<1x8x128xf32>,
    %173 = vector.extract_strided_slice %164 {offsets = [0, 128], sizes = [8, 128], strides = [1, 1]} : vector<8x384xf32> to vector<8x128xf32>
    %c0_307 = arith.constant 0 : index
    %c0_308 = arith.constant 0 : index
    %c256_309 = arith.constant 256 : index
    %174 = vector.load %arg3[%c0_307, %c0_308, %c256_309] : memref<1x8x512xf32, #tpu.memory_space<vmem>>, vector<1x8x128xf32>
    %175 = vector.shape_cast %174 : vector<1x8x128xf32> to vector<8x128xf32>
    %176 = vector.shape_cast %173 : vector<8x128xf32> to vector<1x8x128xf32>
    tpu.vector_store %arg3[%c0_307, %c0_308, %c256_309], %176 {strides = array<i32>} : memref<1x8x512xf32, #tpu.memory_space<vmem>>, vector<1x8x128xf32>,
    %177 = vector.extract_strided_slice %164 {offsets = [0, 256], sizes = [8, 128], strides = [1, 1]} : vector<8x384xf32> to vector<8x128xf32>
    %c0_310 = arith.constant 0 : index
    %c0_311 = arith.constant 0 : index
    %c384 = arith.constant 384 : index
    %178 = vector.load %arg3[%c0_310, %c0_311, %c384] : memref<1x8x512xf32, #tpu.memory_space<vmem>>, vector<1x8x128xf32>
    %179 = vector.shape_cast %178 : vector<1x8x128xf32> to vector<8x128xf32>
    %180 = vector.shape_cast %177 : vector<8x128xf32> to vector<1x8x128xf32>
    tpu.vector_store %arg3[%c0_310, %c0_311, %c384], %180 {strides = array<i32>} : memref<1x8x512xf32, #tpu.memory_space<vmem>>, vector<1x8x128xf32>,
    return
  }
  func.func @transform_0(%arg0: i32) -> (i32, i32, i32, i32) {
    %c0_i32 = arith.constant 0 : i32
    %c0_i32_0 = arith.constant 0 : i32
    %c0_i32_1 = arith.constant 0 : i32
    %c0_i32_2 = arith.constant 0 : i32
    return %arg0, %c0_i32, %c0_i32_0, %c0_i32_1 : i32, i32, i32, i32
  }
  func.func @transform_1(%arg0: i32) -> (i32, i32) {
    %c0_i32 = arith.constant 0 : i32
    %c0_i32_0 = arith.constant 0 : i32
    %c0_i32_1 = arith.constant 0 : i32
    return %c0_i32, %c0_i32_0 : i32, i32
  }
  func.func @transform_2(%arg0: i32) -> (i32, i32, i32) {
    %c0_i32 = arith.constant 0 : i32
    %c0_i32_0 = arith.constant 0 : i32
    %c0_i32_1 = arith.constant 0 : i32
    return %arg0, %c0_i32, %c0_i32_0 : i32, i32, i32
  }
}

</mosaic_0001>

<llo_original>
// kernel: _lambda_.1
$region0: #{_lambda_.1}
  #allocation0 [shape = 'u32[]', space=smem, size = 0x4, offset = 0x4, fixed_abs, tag = 'smem constant byte address 0x4 - core index']
  #allocation1 [shape = 'u32[144,128]{1,0:T(1,128)}', space=vmem, size = 0x12000, scoped, tag = 'internal scratch']
  #allocation2 [shape = 'f32[72,384]{1,0:T(8,128)}', space=vmem, size = 0x1b000, scoped, tag = 'scratch operand']
  %s0 = inlined_call_operand.vmem [shape: f32[2,4,4,150], index: 0, kind: input, shape index: {}]
  %s1 = inlined_call_operand.vmem [shape: f32[8,72], index: 1, kind: input, shape index: {}]
  %s2 = inlined_call_operand.vmem [shape: f32[2,8,512], index: 2, kind: output, shape index: {}]
  %s3 = sld [smem:[#allocation0]]
  $region41: #{_lambda_.1} parent=0
    _
  %s5 = ssub.s32 1, %s3
  %s6 = scalar_select 0, %s5, %s3
  loop: start=0, step=1, limit=4
  $region2: #{_lambda_.1} parent=0 // loop_pre_header
    _
  $region3: #{_lambda_.1} parent=0 // loop_header
    %s8 = sphi 0, %s12
    %p9 = scmp.ge.s32.totalorder %s8, 4
    %s18 = sphi 0, %s20
    %s21 = sphi 0, %s18
    %s22 = sphi 0, %s21
    %s38 = sphi 0, %s22
    %s42 = sphi 0, %s42
    %s44 = sphi 0, %s42
    %s45 = sphi 0, %s44
    %s59 = sphi 0, %s45
    %s65 = sphi 0, %s67
    %s68 = sphi 0, %s65
    %s69 = sphi 0, %s68
    %s85 = sphi 0, %s69
  $region4: #{_lambda_.1} parent=0 // loop_header_branch
    %11 = sbr.rel (%p9) target = $region8
  $region5: #{_lambda_.1} parent=0 // loop_body
    %s13 = ssub.s32 %s8, 1
    %s14 = ssub.s32 %s8, 2
    %s15 = sadd.s32 %s8, 1
    %s16 = ssub.s32 %s8, %s15
    %p17 = scmp.eq.s32.totalorder %s16, 0
    %s19 = sadd.s32 %s18, 1
    %s20 = scalar_select %p17, %s18, %s19
    %p23 = pneg %p17
    %p24 = scmp.eq.s32.totalorder %s8, 1
    %p25 = por %p23, %p24
    %p26 = scmp.ne.s32.totalorder %s18, %s21
    %p27 = scmp.eq.s32.totalorder %s8, 0
    %p28 = por %p26, %p27
    %p29 = scmp.ne.s32.totalorder %s18, %s21
    %p30 = scmp.eq.s32.totalorder %s13, 1
    %p31 = por %p29, %p30
    %p32 = scmp.ne.s32.totalorder %s21, %s22
    %p33 = scmp.eq.s32.totalorder %s13, 0
    %p34 = por %p32, %p33
    %p35 = scmp.ne.s32.totalorder %s21, %s22
    %p36 = scmp.eq.s32.totalorder %s14, 1
    %p37 = por %p35, %p36
    %p39 = scmp.ne.s32.totalorder %s22, %s38
    %p40 = scmp.eq.s32.totalorder %s14, 0
    %p41 = por %p39, %p40
    %s43 = sadd.s32 %s42, 1
    %p46 = scmp.eq.s32.totalorder %s8, 1
    %p47 = scmp.ne.s32.totalorder %s42, %s44
    %p48 = scmp.eq.s32.totalorder %s8, 0
    %p49 = por %p47, %p48
    %p50 = scmp.ne.s32.totalorder %s42, %s44
    %p51 = scmp.eq.s32.totalorder %s13, 1
    %p52 = por %p50, %p51
    %p53 = scmp.ne.s32.totalorder %s44, %s45
    %p54 = scmp.eq.s32.totalorder %s13, 0
    %p55 = por %p53, %p54
    %p56 = scmp.ne.s32.totalorder %s44, %s45
    %p57 = scmp.eq.s32.totalorder %s14, 1
    %p58 = por %p56, %p57
    %p60 = scmp.ne.s32.totalorder %s45, %s59
    %p61 = scmp.eq.s32.totalorder %s14, 0
    %p62 = por %p60, %p61
    %s63 = ssub.s32 %s8, %s15
    %p64 = scmp.eq.s32.totalorder %s63, 0
    %s66 = sadd.s32 %s65, 1
    %s67 = scalar_select %p64, %s65, %s66
    %p70 = pneg %p64
    %p71 = scmp.eq.s32.totalorder %s8, 1
    %p72 = por %p70, %p71
    %p73 = scmp.ne.s32.totalorder %s65, %s68
    %p74 = scmp.eq.s32.totalorder %s8, 0
    %p75 = por %p73, %p74
    %p76 = scmp.ne.s32.totalorder %s65, %s68
    %p77 = scmp.eq.s32.totalorder %s13, 1
    %p78 = por %p76, %p77
    %p79 = scmp.ne.s32.totalorder %s68, %s69
    %p80 = scmp.eq.s32.totalorder %s13, 0
    %p81 = por %p79, %p80
    %p82 = scmp.ne.s32.totalorder %s68, %s69
    %p83 = scmp.eq.s32.totalorder %s14, 1
    %p84 = por %p82, %p83
    %p86 = scmp.ne.s32.totalorder %s69, %s85
    %p87 = scmp.eq.s32.totalorder %s14, 0
    %p88 = por %p86, %p87
    %p89 = scmp.le.s32.totalorder 1, %s8
    %p90 = scmp.lt.s32.totalorder %s8, 3
    %p91 = pnand %p89, %p90
    %p92 = pneg %p91
    // Predicated region
    $region9: #{_lambda_.1} parent=5 // pred_check
      _
    $region10: #{_lambda_.1} parent=5 // pred_check_branch
      %94 = sbr.rel (%p91) target = $region12
    $region11: #{_lambda_.1} parent=5 // pred_region
      %s95 = ssub.s32 %s8, 1
      // Predicated region
      $region13: #{_lambda_.1} parent=11 // pred_check
        %p96 = pneg %p55
      $region14: #{_lambda_.1} parent=11 // pred_check_branch
        %98 = sbr.rel (%p96) target = $region16
      $region15: #{_lambda_.1} parent=11 // pred_region
        _
      $region16: #{_lambda_.1} parent=11 // pred_fallthru
        _
    $region12: #{_lambda_.1} parent=5 // pred_fallthru
      _
    %p99 = scmp.lt.s32.totalorder %s8, 2
    // Predicated region
    $region17: #{_lambda_.1} parent=5 // pred_check
      %p100 = pneg %p99
    $region18: #{_lambda_.1} parent=5 // pred_check_branch
      %102 = sbr.rel (%p100) target = $region20
    $region19: #{_lambda_.1} parent=5 // pred_region
      // Predicated region
      $region21: #{_lambda_.1} parent=19 // pred_check
        %p103 = pneg %p28
      $region22: #{_lambda_.1} parent=19 // pred_check_branch
        %105 = sbr.rel (%p103) target = $region24
      $region23: #{_lambda_.1} parent=19 // pred_region
        %p106 = scmp.lt.s32.totalorder %s8, 1
        %s107 = scalar_select %p106, %s8, 1
        %s108 = smul.addr %s107, 8
        %s109 = smul.addr %s108, 4
        %s110 = scalar_lea.vmem %s0, %s109
      $region24: #{_lambda_.1} parent=19 // pred_fallthru
        _
    $region20: #{_lambda_.1} parent=5 // pred_fallthru
      _
    %p111 = scmp.le.s32.totalorder 1, %s8
    %p112 = scmp.lt.s32.totalorder %s8, 3
    %p113 = pnand %p111, %p112
    %p114 = pneg %p113
    // Predicated region
    $region25: #{_lambda_.1} parent=5 // pred_check
      _
    $region26: #{_lambda_.1} parent=5 // pred_check_branch
      %116 = sbr.rel (%p113) target = $region28
    $region27: #{_lambda_.1} parent=5 // pred_region
      %s117 = ssub.s32 %s8, 1
      %p118 = scmp.lt.s32.totalorder %s13, 1
      %s119 = scalar_select %p118, %s13, 1
      %s120 = smul.addr %s119, 8
      %s121 = smul.addr %s120, 4
      %s122 = scalar_lea.vmem %s0, %s121
      %p123 = pneg %p34
      %p124 = pneg %p31
      %p125 = pneg %p55
      %p126 = pneg %p52
      %p127 = pneg %p81
      %p128 = pneg %p78
      %p129 = scmp.lt.s32.totalorder %s13, 1
      %s130 = scalar_select %p129, %s13, 1
      %s131 = smul.addr %s130, 4
      %s132 = smul.addr %s131, 8
      %s133 = scalar_lea.vmem %s2, %s132
      %p134 = scmp.lt.s32.totalorder %s13, 1
      %s135 = scalar_select %p134, %s13, 1
      %s136 = smul.addr %s135, 8
      %s137 = smul.addr %s136, 4
      %s138 = scalar_lea.vmem %s0, %s137
      %p139 = scmp.lt.s32.totalorder %s13, 1
      %s140 = scalar_select %p139, %s13, 1
      %s141 = smul.addr %s140, 4
      %s142 = smul.addr %s141, 8
      %s143 = scalar_lea.vmem %s2, %s142
      %v144 = vld [vmem:[%s138] sm:$0xf]
      %145 = vst [vmem:[#allocation2] sm:$0xf] %v144
      %v146 = vld [vmem:[%s138] sm:$0xff]
      %v148 = vcombine.low %v146, %v146
      %149 = vrot.lane.b32.xlu0 %v148, 127
      %v150 = vpop.permute.xlu0 %149
      %151 = vrot.lane.b32.xlu0 %v146, 127
      %v152 = vpop.permute.xlu0 %151
      %vm153 = vcmask 1039360
      %v154 = vsel %vm153, %v150, %v152
      %156 = vst [vmem:[#allocation2] sm:$0xf0] %v154
      %v157 = vld [vmem:[%s138] sm:$0xff]
      %v159 = vcombine.high %v157, %v157
      %160 = vrot.lane.b32.xlu0 %v157, 126
      %v161 = vpop.permute.xlu0 %160
      %162 = vrot.lane.b32.xlu0 %v159, 126
      %v163 = vpop.permute.xlu0 %162
      %vm164 = vcmask 1031168
      %v165 = vsel %vm164, %v161, %v163
      %167 = vst [vmem:[#allocation2 + $0x18] sm:$0xf] %v165
      %v168 = vld [vmem:[%s138] sm:$0xff]
      %v170 = vcombine.low %v168, %v168
      %171 = vrot.lane.b32.xlu0 %v170, 118
      %v172 = vpop.permute.xlu0 %171
      %173 = vrot.lane.b32.xlu0 %v168, 118
      %v174 = vpop.permute.xlu0 %173
      %vm175 = vcmask 965632
      %v176 = vsel %vm175, %v172, %v174
      %178 = vst [vmem:[#allocation2 + $0x18] sm:$0xf0] %v176
      %v179 = vld [vmem:[%s138] sm:$0xff]
      %v181 = vcombine.high %v179, %v179
      %182 = vrot.lane.b32.xlu0 %v179, 117
      %v183 = vpop.permute.xlu0 %182
      %184 = vrot.lane.b32.xlu0 %v181, 117
      %v185 = vpop.permute.xlu0 %184
      %vm186 = vcmask 957440
      %v187 = vsel %vm186, %v183, %v185
      %189 = vst [vmem:[#allocation2 + $0x30] sm:$0xf] %v187
      %v190 = vld [vmem:[%s138] sm:$0xff]
      %v192 = vcombine.low %v190, %v190
      %193 = vrot.lane.b32.xlu0 %v192, 116
      %v194 = vpop.permute.xlu0 %193
      %195 = vrot.lane.b32.xlu0 %v190, 116
      %v196 = vpop.permute.xlu0 %195
      %vm197 = vcmask 949248
      %v198 = vsel %vm197, %v194, %v196
      %200 = vst [vmem:[#allocation2 + $0x30] sm:$0xf0] %v198
      %v201 = vld [vmem:[%s138] sm:$0xff]
      %v203 = vcombine.high %v201, %v201
      %204 = vrot.lane.b32.xlu0 %v201, 108
      %v205 = vpop.permute.xlu0 %204
      %206 = vrot.lane.b32.xlu0 %v203, 108
      %v207 = vpop.permute.xlu0 %206
      %vm208 = vcmask 883712
      %v209 = vsel %vm208, %v205, %v207
      %211 = vst [vmem:[#allocation2 + $0x48] sm:$0xf] %v209
      %v212 = vld [vmem:[%s138] sm:$0xff]
      %v214 = vcombine.low %v212, %v212
      %215 = vrot.lane.b32.xlu0 %v214, 107
      %v216 = vpop.permute.xlu0 %215
      %217 = vrot.lane.b32.xlu0 %v212, 107
      %v218 = vpop.permute.xlu0 %217
      %vm219 = vcmask 875520
      %v220 = vsel %vm219, %v216, %v218
      %222 = vst [vmem:[#allocation2 + $0x48] sm:$0xf0] %v220
      %v223 = vld [vmem:[%s138] sm:$0xff]
      %v225 = vcombine.high %v223, %v223
      %226 = vrot.lane.b32.xlu0 %v223, 106
      %v227 = vpop.permute.xlu0 %226
      %228 = vrot.lane.b32.xlu0 %v225, 106
      %v229 = vpop.permute.xlu0 %228
      %vm230 = vcmask 867328
      %v231 = vsel %vm230, %v227, %v229
      %233 = vst [vmem:[#allocation2 + $0x60] sm:$0xf] %v231
      %s234 = scalar_lea.vmem %s138, 8
      %v235 = vld [vmem:[%s234] sm:$0xf]
      %v237 = vcombine.low %v235, %v235
      %239 = vst [vmem:[#allocation2 + $0x60] sm:$0xf0] %v237
      %v240 = vld [vmem:[%s234] sm:$0xff]
      %v242 = vcombine.high %v240, %v240
      %243 = vrot.lane.b32.xlu0 %v240, 127
      %v244 = vpop.permute.xlu0 %243
      %245 = vrot.lane.b32.xlu0 %v242, 127
      %v246 = vpop.permute.xlu0 %245
      %v247 = vsel %vm153, %v244, %v246
      %249 = vst [vmem:[#allocation2 + $0x78] sm:$0xf] %v247
      %v250 = vld [vmem:[%s234] sm:$0xff]
      %v252 = vcombine.low %v250, %v250
      %253 = vrot.lane.b32.xlu0 %v252, 126
      %v254 = vpop.permute.xlu0 %253
      %255 = vrot.lane.b32.xlu0 %v250, 126
      %v256 = vpop.permute.xlu0 %255
      %v257 = vsel %vm164, %v254, %v256
      %259 = vst [vmem:[#allocation2 + $0x78] sm:$0xf0] %v257
      %v260 = vld [vmem:[%s234] sm:$0xff]
      %v262 = vcombine.high %v260, %v260
      %263 = vrot.lane.b32.xlu0 %v260, 118
      %v264 = vpop.permute.xlu0 %263
      %265 = vrot.lane.b32.xlu0 %v262, 118
      %v266 = vpop.permute.xlu0 %265
      %v267 = vsel %vm175, %v264, %v266
      %269 = vst [vmem:[#allocation2 + $0x90] sm:$0xf] %v267
      %v270 = vld [vmem:[%s234] sm:$0xff]
      %v272 = vcombine.low %v270, %v270
      %273 = vrot.lane.b32.xlu0 %v272, 117
      %v274 = vpop.permute.xlu0 %273
      %275 = vrot.lane.b32.xlu0 %v270, 117
      %v276 = vpop.permute.xlu0 %275
      %v277 = vsel %vm186, %v274, %v276
      %279 = vst [vmem:[#allocation2 + $0x90] sm:$0xf0] %v277
      %v280 = vld [vmem:[%s234] sm:$0xff]
      %v282 = vcombine.high %v280, %v280
      %283 = vrot.lane.b32.xlu0 %v280, 116
      %v284 = vpop.permute.xlu0 %283
      %285 = vrot.lane.b32.xlu0 %v282, 116
      %v286 = vpop.permute.xlu0 %285
      %v287 = vsel %vm197, %v284, %v286
      %289 = vst [vmem:[#allocation2 + $0xa8] sm:$0xf] %v287
      %v290 = vld [vmem:[%s234] sm:$0xff]
      %v292 = vcombine.low %v290, %v290
      %293 = vrot.lane.b32.xlu0 %v292, 108
      %v294 = vpop.permute.xlu0 %293
      %295 = vrot.lane.b32.xlu0 %v290, 108
      %v296 = vpop.permute.xlu0 %295
      %v297 = vsel %vm208, %v294, %v296
      %299 = vst [vmem:[#allocation2 + $0xa8] sm:$0xf0] %v297
      %v300 = vld [vmem:[%s234] sm:$0xff]
      %v302 = vcombine.high %v300, %v300
      %303 = vrot.lane.b32.xlu0 %v300, 107
      %v304 = vpop.permute.xlu0 %303
      %305 = vrot.lane.b32.xlu0 %v302, 107
      %v306 = vpop.permute.xlu0 %305
      %v307 = vsel %vm219, %v304, %v306
      %309 = vst [vmem:[#allocation2 + $0xc0] sm:$0xf] %v307
      %v310 = vld [vmem:[%s234] sm:$0xff]
      %v312 = vcombine.low %v310, %v310
      %313 = vrot.lane.b32.xlu0 %v312, 106
      %v314 = vpop.permute.xlu0 %313
      %315 = vrot.lane.b32.xlu0 %v310, 106
      %v316 = vpop.permute.xlu0 %315
      %v317 = vsel %vm230, %v314, %v316
      %319 = vst [vmem:[#allocation2 + $0xc0] sm:$0xf0] %v317
      %v320 = vld [vmem:[%s234] sm:$0xf]
      %321 = vst [vmem:[#allocation2 + $0x8] sm:$0xf] %v320
      %v322 = vld [vmem:[%s234] sm:$0xff]
      %v324 = vcombine.low %v322, %v322
      %325 = vrot.lane.b32.xlu0 %v324, 127
      %v326 = vpop.permute.xlu0 %325
      %327 = vrot.lane.b32.xlu0 %v322, 127
      %v328 = vpop.permute.xlu0 %327
      %v329 = vsel %vm153, %v326, %v328
      %331 = vst [vmem:[#allocation2 + $0x8] sm:$0xf0] %v329
      %v332 = vld [vmem:[%s234] sm:$0xff]
      %v334 = vcombine.high %v332, %v332
      %335 = vrot.lane.b32.xlu0 %v332, 126
      %v336 = vpop.permute.xlu0 %335
      %337 = vrot.lane.b32.xlu0 %v334, 126
      %v338 = vpop.permute.xlu0 %337
      %v339 = vsel %vm164, %v336, %v338
      %341 = vst [vmem:[#allocation2 + $0x20] sm:$0xf] %v339
      %v342 = vld [vmem:[%s234] sm:$0xff]
      %v344 = vcombine.low %v342, %v342
      %345 = vrot.lane.b32.xlu0 %v344, 118
      %v346 = vpop.permute.xlu0 %345
      %347 = vrot.lane.b32.xlu0 %v342, 118
      %v348 = vpop.permute.xlu0 %347
      %v349 = vsel %vm175, %v346, %v348
      %351 = vst [vmem:[#allocation2 + $0x20] sm:$0xf0] %v349
      %v352 = vld [vmem:[%s234] sm:$0xff]
      %v354 = vcombine.high %v352, %v352
      %355 = vrot.lane.b32.xlu0 %v352, 117
      %v356 = vpop.permute.xlu0 %355
      %357 = vrot.lane.b32.xlu0 %v354, 117
      %v358 = vpop.permute.xlu0 %357
      %v359 = vsel %vm186, %v356, %v358
      %361 = vst [vmem:[#allocation2 + $0x38] sm:$0xf] %v359
      %v362 = vld [vmem:[%s234] sm:$0xff]
      %v364 = vcombine.low %v362, %v362
      %365 = vrot.lane.b32.xlu0 %v364, 116
      %v366 = vpop.permute.xlu0 %365
      %367 = vrot.lane.b32.xlu0 %v362, 116
      %v368 = vpop.permute.xlu0 %367
      %v369 = vsel %vm197, %v366, %v368
      %371 = vst [vmem:[#allocation2 + $0x38] sm:$0xf0] %v369
      %v372 = vld [vmem:[%s234] sm:$0xff]
      %v374 = vcombine.high %v372, %v372
      %375 = vrot.lane.b32.xlu0 %v372, 108
      %v376 = vpop.permute.xlu0 %375
      %377 = vrot.lane.b32.xlu0 %v374, 108
      %v378 = vpop.permute.xlu0 %377
      %v379 = vsel %vm208, %v376, %v378
      %381 = vst [vmem:[#allocation2 + $0x50] sm:$0xf] %v379
      %v382 = vld [vmem:[%s234] sm:$0xff]
      %v384 = vcombine.low %v382, %v382
      %385 = vrot.lane.b32.xlu0 %v384, 107
      %v386 = vpop.permute.xlu0 %385
      %387 = vrot.lane.b32.xlu0 %v382, 107
      %v388 = vpop.permute.xlu0 %387
      %v389 = vsel %vm219, %v386, %v388
      %391 = vst [vmem:[#allocation2 + $0x50] sm:$0xf0] %v389
      %v392 = vld [vmem:[%s234] sm:$0xff]
      %v394 = vcombine.high %v392, %v392
      %395 = vrot.lane.b32.xlu0 %v392, 106
      %v396 = vpop.permute.xlu0 %395
      %397 = vrot.lane.b32.xlu0 %v394, 106
      %v398 = vpop.permute.xlu0 %397
      %v399 = vsel %vm230, %v396, %v398
      %401 = vst [vmem:[#allocation2 + $0x68] sm:$0xf] %v399
      %s402 = scalar_lea.vmem %s138, 16
      %v403 = vld [vmem:[%s402] sm:$0xf]
      %v405 = vcombine.low %v403, %v403
      %407 = vst [vmem:[#allocation2 + $0x68] sm:$0xf0] %v405
      %v408 = vld [vmem:[%s402] sm:$0xff]
      %v410 = vcombine.high %v408, %v408
      %411 = vrot.lane.b32.xlu0 %v408, 127
      %v412 = vpop.permute.xlu0 %411
      %413 = vrot.lane.b32.xlu0 %v410, 127
      %v414 = vpop.permute.xlu0 %413
      %v415 = vsel %vm153, %v412, %v414
      %417 = vst [vmem:[#allocation2 + $0x80] sm:$0xf] %v415
      %v418 = vld [vmem:[%s402] sm:$0xff]
      %v420 = vcombine.low %v418, %v418
      %421 = vrot.lane.b32.xlu0 %v420, 126
      %v422 = vpop.permute.xlu0 %421
      %423 = vrot.lane.b32.xlu0 %v418, 126
      %v424 = vpop.permute.xlu0 %423
      %v425 = vsel %vm164, %v422, %v424
      %427 = vst [vmem:[#allocation2 + $0x80] sm:$0xf0] %v425
      %v428 = vld [vmem:[%s402] sm:$0xff]
      %v430 = vcombine.high %v428, %v428
      %431 = vrot.lane.b32.xlu0 %v428, 118
      %v432 = vpop.permute.xlu0 %431
      %433 = vrot.lane.b32.xlu0 %v430, 118
      %v434 = vpop.permute.xlu0 %433
      %v435 = vsel %vm175, %v432, %v434
      %437 = vst [vmem:[#allocation2 + $0x98] sm:$0xf] %v435
      %v438 = vld [vmem:[%s402] sm:$0xff]
      %v440 = vcombine.low %v438, %v438
      %441 = vrot.lane.b32.xlu0 %v440, 117
      %v442 = vpop.permute.xlu0 %441
      %443 = vrot.lane.b32.xlu0 %v438, 117
      %v444 = vpop.permute.xlu0 %443
      %v445 = vsel %vm186, %v442, %v444
      %447 = vst [vmem:[#allocation2 + $0x98] sm:$0xf0] %v445
      %v448 = vld [vmem:[%s402] sm:$0xff]
      %v450 = vcombine.high %v448, %v448
      %451 = vrot.lane.b32.xlu0 %v448, 116
      %v452 = vpop.permute.xlu0 %451
      %453 = vrot.lane.b32.xlu0 %v450, 116
      %v454 = vpop.permute.xlu0 %453
      %v455 = vsel %vm197, %v452, %v454
      %457 = vst [vmem:[#allocation2 + $0xb0] sm:$0xf] %v455
      %v458 = vld [vmem:[%s402] sm:$0xff]
      %v460 = vcombine.low %v458, %v458
      %461 = vrot.lane.b32.xlu0 %v460, 108
      %v462 = vpop.permute.xlu0 %461
      %463 = vrot.lane.b32.xlu0 %v458, 108
      %v464 = vpop.permute.xlu0 %463
      %v465 = vsel %vm208, %v462, %v464
      %467 = vst [vmem:[#allocation2 + $0xb0] sm:$0xf0] %v465
      %v468 = vld [vmem:[%s402] sm:$0xff]
      %v470 = vcombine.high %v468, %v468
      %471 = vrot.lane.b32.xlu0 %v468, 107
      %v472 = vpop.permute.xlu0 %471
      %473 = vrot.lane.b32.xlu0 %v470, 107
      %v474 = vpop.permute.xlu0 %473
      %v475 = vsel %vm219, %v472, %v474
      %477 = vst [vmem:[#allocation2 + $0xc8] sm:$0xf] %v475
      %v478 = vld [vmem:[%s402] sm:$0xff]
      %v480 = vcombine.low %v478, %v478
      %481 = vrot.lane.b32.xlu0 %v480, 106
      %v482 = vpop.permute.xlu0 %481
      %483 = vrot.lane.b32.xlu0 %v478, 106
      %v484 = vpop.permute.xlu0 %483
      %v485 = vsel %vm230, %v482, %v484
      %487 = vst [vmem:[#allocation2 + $0xc8] sm:$0xf0] %v485
      %v488 = vld [vmem:[%s402] sm:$0xf]
      %489 = vst [vmem:[#allocation2 + $0x10] sm:$0xf] %v488
      %v490 = vld [vmem:[%s402] sm:$0xff]
      %v492 = vcombine.low %v490, %v490
      %493 = vrot.lane.b32.xlu0 %v492, 127
      %v494 = vpop.permute.xlu0 %493
      %495 = vrot.lane.b32.xlu0 %v490, 127
      %v496 = vpop.permute.xlu0 %495
      %v497 = vsel %vm153, %v494, %v496
      %499 = vst [vmem:[#allocation2 + $0x10] sm:$0xf0] %v497
      %v500 = vld [vmem:[%s402] sm:$0xff]
      %v502 = vcombine.high %v500, %v500
      %503 = vrot.lane.b32.xlu0 %v500, 126
      %v504 = vpop.permute.xlu0 %503
      %505 = vrot.lane.b32.xlu0 %v502, 126
      %v506 = vpop.permute.xlu0 %505
      %v507 = vsel %vm164, %v504, %v506
      %509 = vst [vmem:[#allocation2 + $0x28] sm:$0xf] %v507
      %v510 = vld [vmem:[%s402] sm:$0xff]
      %v512 = vcombine.low %v510, %v510
      %513 = vrot.lane.b32.xlu0 %v512, 118
      %v514 = vpop.permute.xlu0 %513
      %515 = vrot.lane.b32.xlu0 %v510, 118
      %v516 = vpop.permute.xlu0 %515
      %v517 = vsel %vm175, %v514, %v516
      %519 = vst [vmem:[#allocation2 + $0x28] sm:$0xf0] %v517
      %v520 = vld [vmem:[%s402] sm:$0xff]
      %v522 = vcombine.high %v520, %v520
      %523 = vrot.lane.b32.xlu0 %v520, 117
      %v524 = vpop.permute.xlu0 %523
      %525 = vrot.lane.b32.xlu0 %v522, 117
      %v526 = vpop.permute.xlu0 %525
      %v527 = vsel %vm186, %v524, %v526
      %529 = vst [vmem:[#allocation2 + $0x40] sm:$0xf] %v527
      %v530 = vld [vmem:[%s402] sm:$0xff]
      %v532 = vcombine.low %v530, %v530
      %533 = vrot.lane.b32.xlu0 %v532, 116
      %v534 = vpop.permute.xlu0 %533
      %535 = vrot.lane.b32.xlu0 %v530, 116
      %v536 = vpop.permute.xlu0 %535
      %v537 = vsel %vm197, %v534, %v536
      %539 = vst [vmem:[#allocation2 + $0x40] sm:$0xf0] %v537
      %v540 = vld [vmem:[%s402] sm:$0xff]
      %v542 = vcombine.high %v540, %v540
      %543 = vrot.lane.b32.xlu0 %v540, 108
      %v544 = vpop.permute.xlu0 %543
      %545 = vrot.lane.b32.xlu0 %v542, 108
      %v546 = vpop.permute.xlu0 %545
      %v547 = vsel %vm208, %v544, %v546
      %549 = vst [vmem:[#allocation2 + $0x58] sm:$0xf] %v547
      %v550 = vld [vmem:[%s402] sm:$0xff]
      %v552 = vcombine.low %v550, %v550
      %553 = vrot.lane.b32.xlu0 %v552, 107
      %v554 = vpop.permute.xlu0 %553
      %555 = vrot.lane.b32.xlu0 %v550, 107
      %v556 = vpop.permute.xlu0 %555
      %v557 = vsel %vm219, %v554, %v556
      %559 = vst [vmem:[#allocation2 + $0x58] sm:$0xf0] %v557
      %v560 = vld [vmem:[%s402] sm:$0xff]
      %v562 = vcombine.high %v560, %v560
      %563 = vrot.lane.b32.xlu0 %v560, 106
      %v564 = vpop.permute.xlu0 %563
      %565 = vrot.lane.b32.xlu0 %v562, 106
      %v566 = vpop.permute.xlu0 %565
      %v567 = vsel %vm230, %v564, %v566
      %569 = vst [vmem:[#allocation2 + $0x70] sm:$0xf] %v567
      %s570 = scalar_lea.vmem %s138, 24
      %v571 = vld [vmem:[%s570] sm:$0xf]
      %v573 = vcombine.low %v571, %v571
      %575 = vst [vmem:[#allocation2 + $0x70] sm:$0xf0] %v573
      %v576 = vld [vmem:[%s570] sm:$0xff]
      %v578 = vcombine.high %v576, %v576
      %579 = vrot.lane.b32.xlu0 %v576, 127
      %v580 = vpop.permute.xlu0 %579
      %581 = vrot.lane.b32.xlu0 %v578, 127
      %v582 = vpop.permute.xlu0 %581
      %v583 = vsel %vm153, %v580, %v582
      %585 = vst [vmem:[#allocation2 + $0x88] sm:$0xf] %v583
      %v586 = vld [vmem:[%s570] sm:$0xff]
      %v588 = vcombine.low %v586, %v586
      %589 = vrot.lane.b32.xlu0 %v588, 126
      %v590 = vpop.permute.xlu0 %589
      %591 = vrot.lane.b32.xlu0 %v586, 126
      %v592 = vpop.permute.xlu0 %591
      %v593 = vsel %vm164, %v590, %v592
      %595 = vst [vmem:[#allocation2 + $0x88] sm:$0xf0] %v593
      %v596 = vld [vmem:[%s570] sm:$0xff]
      %v598 = vcombine.high %v596, %v596
      %599 = vrot.lane.b32.xlu0 %v596, 118
      %v600 = vpop.permute.xlu0 %599
      %601 = vrot.lane.b32.xlu0 %v598, 118
      %v602 = vpop.permute.xlu0 %601
      %v603 = vsel %vm175, %v600, %v602
      %605 = vst [vmem:[#allocation2 + $0xa0] sm:$0xf] %v603
      %v606 = vld [vmem:[%s570] sm:$0xff]
      %v608 = vcombine.low %v606, %v606
      %609 = vrot.lane.b32.xlu0 %v608, 117
      %v610 = vpop.permute.xlu0 %609
      %611 = vrot.lane.b32.xlu0 %v606, 117
      %v612 = vpop.permute.xlu0 %611
      %v613 = vsel %vm186, %v610, %v612
      %615 = vst [vmem:[#allocation2 + $0xa0] sm:$0xf0] %v613
      %v616 = vld [vmem:[%s570] sm:$0xff]
      %v618 = vcombine.high %v616, %v616
      %619 = vrot.lane.b32.xlu0 %v616, 116
      %v620 = vpop.permute.xlu0 %619
      %621 = vrot.lane.b32.xlu0 %v618, 116
      %v622 = vpop.permute.xlu0 %621
      %v623 = vsel %vm197, %v620, %v622
      %625 = vst [vmem:[#allocation2 + $0xb8] sm:$0xf] %v623
      %v626 = vld [vmem:[%s570] sm:$0xff]
      %v628 = vcombine.low %v626, %v626
      %629 = vrot.lane.b32.xlu0 %v628, 108
      %v630 = vpop.permute.xlu0 %629
      %631 = vrot.lane.b32.xlu0 %v626, 108
      %v632 = vpop.permute.xlu0 %631
      %v633 = vsel %vm208, %v630, %v632
      %635 = vst [vmem:[#allocation2 + $0xb8] sm:$0xf0] %v633
      %v636 = vld [vmem:[%s570] sm:$0xff]
      %v638 = vcombine.high %v636, %v636
      %639 = vrot.lane.b32.xlu0 %v636, 107
      %v640 = vpop.permute.xlu0 %639
      %641 = vrot.lane.b32.xlu0 %v638, 107
      %v642 = vpop.permute.xlu0 %641
      %v643 = vsel %vm219, %v640, %v642
      %645 = vst [vmem:[#allocation2 + $0xd0] sm:$0xf] %v643
      %v646 = vld [vmem:[%s570] sm:$0xff]
      %v648 = vcombine.low %v646, %v646
      %649 = vrot.lane.b32.xlu0 %v648, 106
      %v650 = vpop.permute.xlu0 %649
      %651 = vrot.lane.b32.xlu0 %v646, 106
      %v652 = vpop.permute.xlu0 %651
      %v653 = vsel %vm230, %v650, %v652
      %655 = vst [vmem:[#allocation2 + $0xd0] sm:$0xf0] %v653
      %v656 = vld [vmem:[%s1] sm:$0xff]
      %v657 = vld [vmem:[#allocation2] sm:$0xff]
      %v658 = vld [vmem:[#allocation2 + $0x8] sm:$0xff]
      %v659 = vld [vmem:[#allocation2 + $0x10] sm:$0xff]
      %v660 = vld [vmem:[#allocation2 + $0x18] sm:$0xff]
      %v661 = vld [vmem:[#allocation2 + $0x20] sm:$0xff]
      %v662 = vld [vmem:[#allocation2 + $0x28] sm:$0xff]
      %v663 = vld [vmem:[#allocation2 + $0x30] sm:$0xff]
      %v664 = vld [vmem:[#allocation2 + $0x38] sm:$0xff]
      %v665 = vld [vmem:[#allocation2 + $0x40] sm:$0xff]
      %v666 = vld [vmem:[#allocation2 + $0x48] sm:$0xff]
      %v667 = vld [vmem:[#allocation2 + $0x50] sm:$0xff]
      %v668 = vld [vmem:[#allocation2 + $0x58] sm:$0xff]
      %v669 = vld [vmem:[#allocation2 + $0x60] sm:$0xff]
      %v670 = vld [vmem:[#allocation2 + $0x68] sm:$0xff]
      %v671 = vld [vmem:[#allocation2 + $0x70] sm:$0xff]
      %v672 = vld [vmem:[#allocation2 + $0x78] sm:$0xff]
      %v673 = vld [vmem:[#allocation2 + $0x80] sm:$0xff]
      %v674 = vld [vmem:[#allocation2 + $0x88] sm:$0xff]
      %v675 = vld [vmem:[#allocation2 + $0x90] sm:$0xff]
      %v676 = vld [vmem:[#allocation2 + $0x98] sm:$0xff]
      %v677 = vld [vmem:[#allocation2 + $0xa0] sm:$0xff]
      %v678 = vld [vmem:[#allocation2 + $0xa8] sm:$0xff]
      %v679 = vld [vmem:[#allocation2 + $0xb0] sm:$0xff]
      %v680 = vld [vmem:[#allocation2 + $0xb8] sm:$0xff]
      %v681 = vld [vmem:[#allocation2 + $0xc0] sm:$0xff]
      %v682 = vld [vmem:[#allocation2 + $0xc8] sm:$0xff]
      %v683 = vld [vmem:[#allocation2 + $0xd0] sm:$0xff]
      %vm684 = vcmask 588800
      %v686 = vsel %vm684, %v656, 0
      %688 = vmatprep.subr.mxu0 %v658
      %689 = vmatpush1.msra.mxu0 %v657
      %690 = vmatprep.subr.mxu0 %v661
      %691 = vmatpush1.msra.mxu0 %v660
      %692 = vmatprep.subr.mxu0 %v664
      %693 = vmatpush1.msra.mxu0 %v663
      %694 = vmatprep.subr.mxu0 %v667
      %695 = vmatpush1.msra.mxu0 %v666
      %696 = vmatprep.subr.mxu0 %v670
      %697 = vmatpush1.msra.mxu0 %v669
      %698 = vmatprep.subr.mxu0 %v673
      %699 = vmatpush1.msra.mxu0 %v672
      %700 = vmatprep.subr.mxu0 %v676
      %701 = vmatpush1.msra.mxu0 %v675
      %702 = vmatprep.subr.mxu0 %v679
      %703 = vmatpush1.msra.mxu0 %v678
      %704 = vmatprep.subr.mxu0 %v682
      %705 = vmatpush1.msra.mxu0 %v681
      %706 = vmatprep.subr.mxu0 0.0
      %707 = vmatpush1.msra.mxu0 0.0
      %708 = vmatprep.subr.mxu0 0.0
      %709 = vmatpush1.msra.mxu0 0.0
      %710 = vmatprep.subr.mxu0 0.0
      %711 = vmatpush1.msra.mxu0 0.0
      %712 = vmatprep.subr.mxu0 0.0
      %713 = vmatpush1.msra.mxu0 0.0
      %714 = vmatprep.subr.mxu0 0.0
      %715 = vmatpush1.msra.mxu0 0.0
      %716 = vmatprep.subr.mxu0 0.0
      %717 = vmatpush1.msra.mxu0 0.0
      %718 = vmatprep.subr.mxu0 0.0
      %719 = vmatpush1.msra.mxu0 0.0
      %720 = vmatprep.subr.mxu0 0.0
      %721 = vmatpush1.msra.mxu0 0.0
      %722 = vmatprep.subr.mxu0 0.0
      %723 = vmatpush1.msra.mxu0 0.0
      %724 = vmatprep.subr.mxu0 0.0
      %725 = vmatpush1.msra.mxu0 0.0
      %726 = vmatprep.subr.mxu0 0.0
      %727 = vmatpush1.msra.mxu0 0.0
      %728 = vmatprep.subr.mxu0 0.0
      %729 = vmatpush1.msra.mxu0 0.0
      %730 = vmatprep.subr.mxu0 0.0
      %731 = vmatpush1.msra.mxu0 0.0
      %732 = vmatprep.subr.mxu0 0.0
      %733 = vmatpush1.msra.mxu0 0.0
      %734 = vmatprep.subr.mxu0 0.0
      %735 = vmatpush1.msra.mxu0 0.0
      %736 = vmatprep.subr.mxu0 0.0
      %737 = vmatpush1.msra.mxu0 0.0
      %738 = vmatprep.subr.mxu0 0.0
      %739 = vmatpush1.msra.mxu0 0.0
      %740 = vmatprep.subr.mxu0 0.0
      %741 = vmatpush1.msra.mxu0 0.0
      %742 = vmatprep.subr.mxu0 0.0
      %743 = vmatpush1.msra.mxu0 0.0
      %744 = vmatprep.subr.mxu0 0.0
      %745 = vmatpush1.msra.mxu0 0.0
      %746 = vmatprep.subr.mxu0 0.0
      %747 = vmatpush1.msra.mxu0 0.0
      %748 = vmatprep.subr.mxu0 0.0
      %749 = vmatpush1.msra.mxu0 0.0
      %750 = vmatprep.subr.mxu0 0.0
      %751 = vmatpush1.msra.mxu0 0.0
      %752 = vmatprep.mubr.f32.mxu0 0.0
      %753 = vmatmul.mubr.f32.gmra.mrb[0].mxu0 %v686
      %v754 = vpop.f32.mrb[0].mxu0
      %v755 = vadd.f32 0.0, %v754
      %v756 = vpop.f32.mrb[0].mxu0
      %v757 = vadd.f32 0.0, %v756
      %758 = vdwg.mxu0
      %759 = vmatprep.subr.mxu0 0.0
      %760 = vmatpush1.msra.mxu0 %v659
      %761 = vmatprep.subr.mxu0 0.0
      %762 = vmatpush1.msra.mxu0 %v662
      %763 = vmatprep.subr.mxu0 0.0
      %764 = vmatpush1.msra.mxu0 %v665
      %765 = vmatprep.subr.mxu0 0.0
      %766 = vmatpush1.msra.mxu0 %v668
      %767 = vmatprep.subr.mxu0 0.0
      %768 = vmatpush1.msra.mxu0 %v671
      %769 = vmatprep.subr.mxu0 0.0
      %770 = vmatpush1.msra.mxu0 %v674
      %771 = vmatprep.subr.mxu0 0.0
      %772 = vmatpush1.msra.mxu0 %v677
      %773 = vmatprep.subr.mxu0 0.0
      %774 = vmatpush1.msra.mxu0 %v680
      %775 = vmatprep.subr.mxu0 0.0
      %776 = vmatpush1.msra.mxu0 %v683
      %777 = vmatprep.subr.mxu0 0.0
      %778 = vmatpush1.msra.mxu0 0.0
      %779 = vmatprep.subr.mxu0 0.0
      %780 = vmatpush1.msra.mxu0 0.0
      %781 = vmatprep.subr.mxu0 0.0
      %782 = vmatpush1.msra.mxu0 0.0
      %783 = vmatprep.subr.mxu0 0.0
      %784 = vmatpush1.msra.mxu0 0.0
      %785 = vmatprep.subr.mxu0 0.0
      %786 = vmatpush1.msra.mxu0 0.0
      %787 = vmatprep.subr.mxu0 0.0
      %788 = vmatpush1.msra.mxu0 0.0
      %789 = vmatprep.subr.mxu0 0.0
      %790 = vmatpush1.msra.mxu0 0.0
      %791 = vmatprep.subr.mxu0 0.0
      %792 = vmatpush1.msra.mxu0 0.0
      %793 = vmatprep.subr.mxu0 0.0
      %794 = vmatpush1.msra.mxu0 0.0
      %795 = vmatprep.subr.mxu0 0.0
      %796 = vmatpush1.msra.mxu0 0.0
      %797 = vmatprep.subr.mxu0 0.0
      %798 = vmatpush1.msra.mxu0 0.0
      %799 = vmatprep.subr.mxu0 0.0
      %800 = vmatpush1.msra.mxu0 0.0
      %801 = vmatprep.subr.mxu0 0.0
      %802 = vmatpush1.msra.mxu0 0.0
      %803 = vmatprep.subr.mxu0 0.0
      %804 = vmatpush1.msra.mxu0 0.0
      %805 = vmatprep.subr.mxu0 0.0
      %806 = vmatpush1.msra.mxu0 0.0
      %807 = vmatprep.subr.mxu0 0.0
      %808 = vmatpush1.msra.mxu0 0.0
      %809 = vmatprep.subr.mxu0 0.0
      %810 = vmatpush1.msra.mxu0 0.0
      %811 = vmatprep.subr.mxu0 0.0
      %812 = vmatpush1.msra.mxu0 0.0
      %813 = vmatprep.subr.mxu0 0.0
      %814 = vmatpush1.msra.mxu0 0.0
      %815 = vmatprep.subr.mxu0 0.0
      %816 = vmatpush1.msra.mxu0 0.0
      %817 = vmatprep.subr.mxu0 0.0
      %818 = vmatpush1.msra.mxu0 0.0
      %819 = vmatprep.subr.mxu0 0.0
      %820 = vmatpush1.msra.mxu0 0.0
      %821 = vmatprep.subr.mxu0 0.0
      %822 = vmatpush1.msra.mxu0 0.0
      %823 = vmatprep.mubr.f32.mxu0 0.0
      %824 = vmatmul.mubr.f32.gmra.mrb[0].mxu0 %v686
      %v825 = vpop.f32.mrb[0].mxu0
      %v826 = vadd.f32 0.0, %v825
      %v827 = vpop.f32.mrb[0].mxu0
      %828 = vdwg.mxu0
      %829 = vst [vmem:[%s143] sm:$0xff] %v755
      %830 = vst [vmem:[%s143 + $0x8] sm:$0xff] %v755
      %831 = vst [vmem:[%s143 + $0x10] sm:$0xff] %v757
      %832 = vst [vmem:[%s143 + $0x18] sm:$0xff] %v826
      %p833 = scmp.lt.s32.totalorder %s13, 1
      %s834 = scalar_select %p833, %s13, 1
      %s835 = smul.addr %s834, 4
      %s836 = smul.addr %s835, 8
      %s837 = scalar_lea.vmem %s2, %s836
      // Predicated region
      $region29: #{_lambda_.1} parent=27 // pred_check
        %p838 = pneg %p78
      $region30: #{_lambda_.1} parent=27 // pred_check_branch
        %840 = sbr.rel (%p838) target = $region32
      $region31: #{_lambda_.1} parent=27 // pred_region
        _
      $region32: #{_lambda_.1} parent=27 // pred_fallthru
        _
    $region28: #{_lambda_.1} parent=5 // pred_fallthru
      _
    %p841 = scmp.le.s32.totalorder 2, %s8
    // Predicated region
    $region33: #{_lambda_.1} parent=5 // pred_check
      %p842 = pneg %p841
    $region34: #{_lambda_.1} parent=5 // pred_check_branch
      %844 = sbr.rel (%p842) target = $region36
    $region35: #{_lambda_.1} parent=5 // pred_region
      %s845 = ssub.s32 %s8, 2
      // Predicated region
      $region37: #{_lambda_.1} parent=35 // pred_check
        %p846 = pneg %p84
      $region38: #{_lambda_.1} parent=35 // pred_check_branch
        %848 = sbr.rel (%p846) target = $region40
      $region39: #{_lambda_.1} parent=35 // pred_region
        %p849 = scmp.lt.s32.totalorder %s14, 1
        %s850 = scalar_select %p849, %s14, 1
        %s851 = smul.addr %s850, 4
        %s852 = smul.addr %s851, 8
        %s853 = scalar_lea.vmem %s2, %s852
      $region40: #{_lambda_.1} parent=35 // pred_fallthru
        _
    $region36: #{_lambda_.1} parent=5 // pred_fallthru
      _
  $region6: #{_lambda_.1} parent=0 // loop_footer
    %s12 = sadd.s32 1, %s8
  $region7: #{_lambda_.1} parent=0 // loop_footer_branch
    %7 = sbr.rel target = $region3
  $region8: #{_lambda_.1} parent=0 // loop_exit
    _

</llo_original>
